<compile_context>
chip_gen: v7x
topology: tpu7x:2x2x1
jax: 0.10.0
libtpu: 0.0.40
codegen_flags: <defaults>
</compile_context>

<pallas_src>
import functools
import math

import jax
import jax.numpy as jnp
from jax.experimental import pallas as pl
from jax.experimental.pallas import tpu as pltpu


VMEM_LIMIT = 32 * 1024 * 1024   # explicit, conservative for v7x (64 MiB phys)


# ----------------------------------------------------------------------------
# helpers
# ----------------------------------------------------------------------------
def _round_up(x, m):
    return (x + m - 1) // m * m


def _choose_tn(N):
    if N % 256 == 0:
        return 256
    if N % 128 == 0:
        return 128
    return N            # full-extent lane block (masked stores, no pad/slice)


def _choose_tm(M, K):
    cap = 4 << 20       # bf16 activation-block cap (safe on v5e/v7x VMEM)
    if M <= 256:
        return M        # full block
    for tm in (1024, 512, 256, 128, 64, 32, 16, 8):
        if tm <= M // 2 and M % tm == 0 and tm * K * 2 <= cap:
            return tm
    return M


def _choose_th(Ho, Wo):
    th = max(1, min(Ho, 512 // max(Wo, 1)))
    while Ho % th:
        th -= 1
    # give the row axis >= 2 grid steps where possible (v7x megacore)
    if Ho // th == 1 and Ho % 2 == 0 and Ho >= 2:
        th = Ho // 2
    return th


# ----------------------------------------------------------------------------
# Pallas kernel 1: fused bf16 matmul + bias + activation (1x1 convs, linears,
#                  and the im2col fallback path)
# ----------------------------------------------------------------------------
def _mm_kernel(x_ref, w_ref, b_ref, o_ref, *, act):
    # bf16 operands -> f32 accumulation on the MXU; epilogue stays in f32.
    r = jnp.dot(x_ref[...], w_ref[...], preferred_element_type=jnp.float32)
    r = r + b_ref[...]
    if act == "silu":
        r = r * pl.reciprocal(1.0 + jnp.exp(-r), approx=True)
    elif act == "relu":
        r = jnp.maximum(r, 0.0)
    elif act == "sigmoid":
        r = pl.reciprocal(1.0 + jnp.exp(-r), approx=True)
    o_ref[...] = r.astype(o_ref.dtype)


def matmul_bias_act(x, w, b=None, act="none", out_dtype=jnp.bfloat16):
    """x:(M,K) @ w:(K,N) + b, then activation — bf16 MXU path via Pallas.

    K is a single full-extent block (never padded); N uses a 128/256 lane tile
    when divisible, otherwise a full-extent block (no weight padding, no
    output slicing).
    """
    M, K = x.shape
    K2, N = w.shape
    assert K == K2
    if b is None:
        b = jnp.zeros((N,), jnp.float32)

    tn = _choose_tn(N)
    tm = _choose_tm(M, K)
    Mp = _round_up(M, tm)

    xb = x.astype(jnp.bfloat16)
    if Mp != M:
        xb = jnp.pad(xb, ((0, Mp - M), (0, 0)))
    wb = w.astype(jnp.bfloat16)
    bp = b.astype(jnp.float32).reshape(1, N)

    flops = int(2 * Mp * K * N)
    bytes_accessed = int((Mp * K + K * N) * 2 + Mp * N * 2 + N * 4)
    transcendentals = int(Mp * N) if act in ("silu", "sigmoid") else 0

    out = pl.pallas_call(
        functools.partial(_mm_kernel, act=act),
        out_shape=jax.ShapeDtypeStruct((Mp, N), out_dtype),
        grid_spec=pltpu.PrefetchScalarGridSpec(
            num_scalar_prefetch=0,
            grid=(Mp // tm, N // tn),
            in_specs=[
                pl.BlockSpec((tm, K), lambda i, j: (i, 0)),   # full-K block
                pl.BlockSpec((K, tn), lambda i, j: (0, j)),
                pl.BlockSpec((1, tn), lambda i, j: (0, j)),
            ],
            out_specs=pl.BlockSpec((tm, tn), lambda i, j: (i, j)),
        ),
        compiler_params=pltpu.CompilerParams(
            dimension_semantics=("parallel", "parallel"),
            vmem_limit_bytes=VMEM_LIMIT),
        cost_estimate=pl.CostEstimate(flops=flops,
                                      transcendentals=transcendentals,
                                      bytes_accessed=bytes_accessed),
    )(xb, wb, bp)
    if Mp != M:
        out = out[:M]
    return out


# ----------------------------------------------------------------------------
# Pallas kernel 2: fused k x k stride-1 convolution (NHWC).
#   - padded input stays in HBM (pl.ANY); each grid step DMAs one row band
#     (with halo) into VMEM scratch and accumulates the k*k shifted-window
#     matmuls on the MXU (f32 accumulator), then bias + activation + bf16 store.
#   - the im2col matrix never exists in HBM.
# ----------------------------------------------------------------------------
def _conv_fused_kernel(x_ref, w_ref, b_ref, o_ref, xbuf, sem, *,
                       kh, kw, th, wo, n_hblk, hp, cin, act):
    i = pl.program_id(0)                       # (image, row-block) combined
    n = i // n_hblk
    hb = i - n * n_hblk
    start = n * hp + hb * th
    # DMA the padded row band [start, start + th + kh - 1) into VMEM.
    # (At the current output-channel tilings the oc grid axis has extent 1, so
    #  every input row is fetched from HBM exactly once.)
    cp = pltpu.make_async_copy(x_ref.at[pl.ds(start, th + kh - 1)], xbuf,
                               sem.at[0])
    cp.start()
    cp.wait()

    acc = jnp.zeros(o_ref.shape, jnp.float32)
    for di in range(kh):
        for dj in range(kw):
            t = di * kw + dj
            win = xbuf[pl.ds(di, th), pl.ds(dj, wo), :].reshape(th * wo, cin)
            acc = acc + jnp.dot(win, w_ref[t],
                                preferred_element_type=jnp.float32)
    r = acc + b_ref[...]
    if act == "silu":
        r = r * pl.reciprocal(1.0 + jnp.exp(-r), approx=True)
    elif act == "relu":
        r = jnp.maximum(r, 0.0)
    elif act == "sigmoid":
        r = pl.reciprocal(1.0 + jnp.exp(-r), approx=True)
    o_ref[...] = r.astype(o_ref.dtype)


def _conv_fused_s1(x, w, bias, *, act, out_dtype):
    N, H, W, C = x.shape
    O, _, kh, kw = w.shape
    p = kh // 2
    Ho, Wo = H, W
    Hp, Wp = H + 2 * p, W + 2 * p

    th = _choose_th(Ho, Wo)
    n_hblk = Ho // th
    tn = _choose_tn(O)

    xp = jnp.pad(x.astype(jnp.bfloat16), ((0, 0), (p, p), (p, p), (0, 0)))
    xp = xp.reshape(N * Hp, Wp, C)
    wt = jnp.transpose(w, (2, 3, 1, 0)).reshape(kh * kw, C, O)
    wt = wt.astype(jnp.bfloat16)
    if bias is None:
        bias = jnp.zeros((O,), jnp.float32)
    bp = bias.astype(jnp.float32).reshape(1, O)

    M = N * Ho * Wo
    flops = int(2 * M * kh * kw * C * O)
    bytes_accessed = int(N * Hp * Wp * C * 2 + kh * kw * C * O * 2 + M * O * 2)
    transcendentals = int(M * O) if act in ("silu", "sigmoid") else 0

    kernel = functools.partial(_conv_fused_kernel, kh=kh, kw=kw, th=th, wo=Wo,
                               n_hblk=n_hblk, hp=Hp, cin=C, act=act)
    out = pl.pallas_call(
        kernel,
        out_shape=jax.ShapeDtypeStruct((M, O), out_dtype),
        grid_spec=pltpu.PrefetchScalarGridSpec(
            num_scalar_prefetch=0,
            grid=(N * n_hblk, O // tn),
            in_specs=[
                pl.BlockSpec(memory_space=pl.ANY),                 # padded input (HBM)
                pl.BlockSpec((kh * kw, C, tn), lambda i, j: (0, 0, j)),
                pl.BlockSpec((1, tn), lambda i, j: (0, j)),
            ],
            out_specs=pl.BlockSpec((th * Wo, tn), lambda i, j: (i, j)),
            scratch_shapes=[
                pltpu.VMEM((th + kh - 1, Wp, C), jnp.bfloat16),
                pltpu.SemaphoreType.DMA((1,)),
            ],
        ),
        compiler_params=pltpu.CompilerParams(
            dimension_semantics=("parallel", "parallel"),
            vmem_limit_bytes=VMEM_LIMIT),
        cost_estimate=pl.CostEstimate(flops=flops,
                                      transcendentals=transcendentals,
                                      bytes_accessed=bytes_accessed),
    )(xp, wt, bp)
    return out.reshape(N, Ho, Wo, O)


# ----------------------------------------------------------------------------
# Pallas kernel 3: attention  softmax(Q K^T / sqrt(d)) V — grid over heads
# ----------------------------------------------------------------------------
def _attn_kernel(q_ref, k_ref, v_ref, o_ref, *, scale):
    q = q_ref[...]
    k = k_ref[...]
    v = v_ref[...]
    s = jnp.einsum("bqd,bkd->bqk", q, k,
                   preferred_element_type=jnp.float32) * scale
    s = s - jnp.max(s, axis=-1, keepdims=True)
    p = jnp.exp(s)
    p = p * pl.reciprocal(jnp.sum(p, axis=-1, keepdims=True), approx=True)
    o = jnp.einsum("bqk,bkd->bqd", p.astype(v.dtype), v,
                   preferred_element_type=jnp.float32)
    o_ref[...] = o.astype(o_ref.dtype)


def attention(q, k, v):
    """q:(BH,nq,d)  k:(BH,nk,d)  v:(BH,nk,dv) -> (BH,nq,dv). Grid over heads."""
    BH, nq, d = q.shape
    _, nk, dv = v.shape
    scale = 1.0 / math.sqrt(d)
    return pl.pallas_call(
        functools.partial(_attn_kernel, scale=scale),
        out_shape=jax.ShapeDtypeStruct((BH, nq, dv), jnp.bfloat16),
        grid_spec=pltpu.PrefetchScalarGridSpec(
            num_scalar_prefetch=0,
            grid=(BH,),
            in_specs=[
                pl.BlockSpec((1, nq, d), lambda h: (h, 0, 0)),
                pl.BlockSpec((1, nk, d), lambda h: (h, 0, 0)),
                pl.BlockSpec((1, nk, dv), lambda h: (h, 0, 0)),
            ],
            out_specs=pl.BlockSpec((1, nq, dv), lambda h: (h, 0, 0)),
        ),
        compiler_params=pltpu.CompilerParams(
            dimension_semantics=("parallel",)),
    )(q.astype(jnp.bfloat16), k.astype(jnp.bfloat16), v.astype(jnp.bfloat16))


# ----------------------------------------------------------------------------
# Pallas kernel 4: DFL (softmax over reg_max bins + expectation), lane-dense A
# ----------------------------------------------------------------------------
def _dfl_kernel(x_ref, o_ref):
    x = x_ref[...]                                   # (1, reg_max, A)
    x = x - jnp.max(x, axis=1, keepdims=True)
    p = jnp.exp(x)
    p = p * pl.reciprocal(jnp.sum(p, axis=1, keepdims=True), approx=True)
    idx = jax.lax.broadcasted_iota(jnp.float32, p.shape, 1)
    o_ref[...] = jnp.sum(p * idx, axis=1, keepdims=True)   # (1, 1, A)


def dfl_pallas(box, reg_max=16):
    """box:(b, 4*reg_max, A) -> (b, 4, A) — matches DFL.forward exactly."""
    b, c, A = box.shape
    G = b * 4
    x = box.reshape(G, reg_max, A).astype(jnp.float32)
    out = pl.pallas_call(
        _dfl_kernel,
        out_shape=jax.ShapeDtypeStruct((G, 1, A), jnp.float32),
        grid_spec=pltpu.PrefetchScalarGridSpec(
            num_scalar_prefetch=0,
            grid=(G,),
            in_specs=[pl.BlockSpec((1, reg_max, A), lambda g: (g, 0, 0))],
            out_specs=pl.BlockSpec((1, 1, A), lambda g: (g, 0, 0)),
        ),
        compiler_params=pltpu.CompilerParams(
            dimension_semantics=("parallel",)),
    )(x)
    return out.reshape(b, 4, A)


# ----------------------------------------------------------------------------
# conv / pooling / upsample glue (NHWC, bf16 activations, no layout transposes)
# ----------------------------------------------------------------------------
def conv2d_nhwc(x, w, bias, *, s=1, act="silu", out_dtype=jnp.bfloat16):
    """PyTorch-semantics Conv2d (autopad = k//2) + bias + activation. NHWC."""
    O, C, kh, kw = w.shape
    k = kh
    p = k // 2
    N, H, W, Cc = x.shape
    assert Cc == C
    if k == 1 and s == 1:
        y = matmul_bias_act(x.reshape(N * H * W, C), w.reshape(O, C).T,
                            bias, act=act, out_dtype=out_dtype)
        return y.reshape(N, H, W, O)
    if (s == 1 and W % 8 == 0
            and k * k * C * O * 2 <= (8 << 20)
            and (H + 2 * p) * (W + 2 * p) * C * 2 <= (8 << 20)):
        return _conv_fused_s1(x, w, bias, act=act, out_dtype=out_dtype)
    # fallback: materialized im2col (stride-2 convs / awkward widths), bf16
    xb = x.astype(jnp.bfloat16)
    xp = jnp.pad(xb, ((0, 0), (p, p), (p, p), (0, 0)))
    Ho = (H + 2 * p - k) // s + 1
    Wo = (W + 2 * p - k) // s + 1
    cols = []
    for di in range(k):
        for dj in range(k):
            cols.append(xp[:, di:di + (Ho - 1) * s + 1:s,
                           dj:dj + (Wo - 1) * s + 1:s, :])
    patches = jnp.concatenate(cols, axis=-1)          # (N,Ho,Wo, k*k*C)
    xm = patches.reshape(N * Ho * Wo, k * k * C)
    wm = jnp.transpose(w, (2, 3, 1, 0)).reshape(k * k * C, O)
    y = matmul_bias_act(xm, wm, bias, act=act, out_dtype=out_dtype)
    return y.reshape(N, Ho, Wo, O)


def conv_block(x, p, s=1, act="silu", out_dtype=jnp.bfloat16):
    return conv2d_nhwc(x, p["w"], p["b"], s=s, act=act, out_dtype=out_dtype)


def upsample2(x):            # nn.Upsample(scale_factor=2, mode='nearest')
    return jnp.repeat(jnp.repeat(x, 2, axis=1), 2, axis=2)


def avg_pool(x, ps):         # nn.AvgPool2d(ps), NHWC
    b, h, w, c = x.shape
    x32 = x.astype(jnp.float32)
    return x32.reshape(b, h // ps[0], ps[0], w // ps[1], ps[1], c).mean(axis=(2, 4))


def transpose_qkv(X, num_heads):
    b, n, e = X.shape
    X = X.reshape(b, n, num_heads, e // num_heads)
    X = jnp.transpose(X, (0, 2, 1, 3))
    return X.reshape(b * num_heads, n, e // num_heads)


# ----------------------------------------------------------------------------
# model sub-blocks (NHWC: channel ops act on the last axis)
# ----------------------------------------------------------------------------
def ca_forward(x, fc1, fc2):
    # TODO(synk): `CA` class missing from reference — GAM-style channel
    #             attention stand-in.
    b, h, w, c = x.shape
    a = matmul_bias_act(x.reshape(b * h * w, c), fc1["w"], fc1["b"], act="relu")
    a = matmul_bias_act(a, fc2["w"], fc2["b"], act="sigmoid")
    return x * a.reshape(b, h, w, c)


def csha_forward(x, d):
    x1 = ca_forward(x, d["ca_fc1"], d["ca_fc2"])
    y = conv_block(x1, d["sa"][0])
    y = conv_block(y, d["sa"][1])
    return y + x1


def mgfab_forward(x1, d, ch1):
    half = ch1 // 2
    x1_0, x1_1 = x1[..., :half], x1[..., half:]
    x1_2 = csha_forward(x1_1, d)
    return conv_block(jnp.concatenate([x1_0, x1_1, x1_2], axis=-1),
                      d["mgfab_conv2"])


def cross_attention_forward(x1, x2, d, num_heads=8):
    """x1: query source (high-level), x2: key/value source (low-level), NHWC."""
    ps0, ps1 = d["ps"]
    b, h, w, c = x2.shape
    cc = c // num_heads
    py, px = h // ps0, w // ps1

    # value: (b*heads, P, cc*ps0*ps1) — identical to the PyTorch flatten order.
    # TODO(synk): fold this pack (and the unpack below) into the attention
    #             kernel's BlockSpec index_map to keep stores lane-dense.
    v = x2.reshape(b, py, ps0, px, ps1, num_heads, cc)
    v = jnp.transpose(v, (0, 5, 1, 3, 6, 2, 4))
    value = v.reshape(b * num_heads, py * px, cc * ps0 * ps1)

    # key
    pooled = avg_pool(x2, (ps0, ps1)).reshape(b, py * px, c)
    key = matmul_bias_act(pooled.reshape(b * py * px, c), d["key"]["w"], None,
                          act="none").reshape(b, py * px, 256)
    key = transpose_qkv(key, num_heads)                 # (b*H, P, 32)

    # query (1 or 2 stride-2 Convs)
    q = x1
    for qp in d["q"]:
        q = conv_block(q, qp, s=2)
    bq, qh, qw, ce = q.shape
    query = q.reshape(bq, qh * qw, ce)
    query = transpose_qkv(query, num_heads)             # (b*H, nq, 32)

    P = py * px
    assert query.shape[1] >= P, "query count must cover the patch grid"

    # dropout on weights: identity (eval mode)
    y = attention(query, key, value)                    # (b*H, nq, cc*ps0*ps1)
    y = y[:, :P]                                        # PyTorch uses first P

    o = y.reshape(b, num_heads, py, px, cc, ps0, ps1)
    o = jnp.transpose(o, (0, 2, 5, 3, 6, 1, 4))         # b,py,ps0,px,ps1,H,cc
    return o.reshape(b, py * ps0, px * ps1, num_heads * cc)


def csfa_forward(x1, x2, d, ch1):
    x1_up = upsample2(x1)
    x2a = cross_attention_forward(x1, x2, d)
    y = x2a
    for cp in d["conv3"]:
        y = conv_block(y, cp)
    x2_out = y + x2a
    x1_out = mgfab_forward(x1_up, d, ch1)
    return jnp.concatenate([x1_out, x2_out], axis=-1)


def make_anchors(feats, strides, offset=0.5):
    anchor_points, stride_tensor = [], []
    for feat, stride in zip(feats, strides):
        _, _, h, w = feat.shape
        sx = jnp.arange(w, dtype=jnp.float32) + offset
        sy = jnp.arange(h, dtype=jnp.float32) + offset
        syy, sxx = jnp.meshgrid(sy, sx, indexing="ij")
        anchor_points.append(jnp.stack((sxx, syy), axis=-1).reshape(-1, 2))
        stride_tensor.append(jnp.full((h * w, 1), stride, jnp.float32))
    return jnp.concatenate(anchor_points, 0), jnp.concatenate(stride_tensor, 0)


# ----------------------------------------------------------------------------
# deterministic parameter construction
# ----------------------------------------------------------------------------
class ParamGen:
    def __init__(self, seed=0):
        self.key = jax.random.PRNGKey(seed)
        self.count = 0

    def _next(self):
        self.count += 1
        return jax.random.fold_in(self.key, self.count)

    def conv(self, c_in, c_out, k):
        fan_in = c_in * k * k
        w = jax.random.normal(self._next(), (c_out, c_in, k, k),
                              jnp.float32) / math.sqrt(fan_in)
        return {"w": w, "b": jnp.zeros((c_out,), jnp.float32)}

    def linear(self, c_in, c_out, bias=True):
        w = jax.random.normal(self._next(), (c_in, c_out),
                              jnp.float32) / math.sqrt(c_in)
        b = jnp.zeros((c_out,), jnp.float32) if bias else None
        return {"w": w, "b": b}


def build_csfa(pg, ch1, ch2, n, ps):
    half = ch1 // 2
    d = {
        "ca_fc1": pg.linear(half, half // 4),
        "ca_fc2": pg.linear(half // 4, half),
        "sa": [pg.conv(half, half, 3), pg.conv(half, half, 3)],
        "mgfab_conv2": pg.conv(3 * ch1 // 2, ch1, 1),
        "key": pg.linear(ch2, 256, bias=False),
        "ps": tuple(ps),
    }
    if n > 1:
        d["q"] = [pg.conv(ch1, 256, 3), pg.conv(256, 256, 3)]
    else:
        d["q"] = [pg.conv(ch1, 256, 3)]
    d["conv3"] = [pg.conv(ch2, ch2, 3) for _ in range(1 if ps[0] < 5 else 2)]
    return d


def build_params(seed, base, deep_mul, num_classes, input_shape):
    pg = ParamGen(seed)
    # Reference uses feature_hw // 10 (closes only at 640x640); generalized to
    # patches-per-axis = input // 64 (== 10 at 640) -> identical patch sizes.
    ppa = [i // 64 for i in input_shape]
    hw1 = [i // 16 for i in input_shape]
    ps1 = [h // p for h, p in zip(hw1, ppa)]
    hw2 = [i // 8 for i in input_shape]
    ps2 = [h // p for h, p in zip(hw2, ppa)]
    hw3 = [i // 4 for i in input_shape]
    ps3 = [h // p for h, p in zip(hw3, ppa)]

    P = {}
    # TODO(synk): real Backbone architecture unavailable — simple stride pyramid.
    P["backbone"] = [
        pg.conv(3, base, 3),
        pg.conv(base, base * 2, 3),
        pg.conv(base * 2, base * 4, 3),
        pg.conv(base * 4, base * 8, 3),
        pg.conv(base * 8, int(base * 16 * deep_mul), 3),
    ]
    P["adapter"] = pg.conv(int(base * 16 * deep_mul), base * 16, 1)
    P["csfa1"] = build_csfa(pg, base * 16, base * 8, 1, ps1)
    P["conv_for_csfa1"] = pg.conv(base * 24, base * 16, 3)
    P["csfa2"] = build_csfa(pg, base * 8, base * 4, 2, ps2)
    P["conv_for_csfa2"] = pg.conv(base * 12, base * 8, 3)
    P["csfa3"] = build_csfa(pg, base * 16, base * 8, 2, ps2)
    P["conv_for_csfa3"] = pg.conv(base * 24, base * 16, 3)
    P["conv_for_cat1"] = pg.conv(base * 6, base * 4, 3)
    P["conv_for_cat2"] = pg.conv(base * 12, base * 8, 3)
    P["conv_for_cat3"] = pg.conv(base * 24, base * 16, 3)
    P["pa"] = {"q": [pg.conv(base * 16, 256, 3)],
               "key": pg.linear(2 * base, 256, bias=False),
               "ps": tuple(ps3)}
    P["conv_for_pa"] = pg.conv(2 * base, 2 * base, 7)
    P["conv_all"] = pg.conv(base * 30, base * 30, 1)
    ch0 = base * 30
    reg_max = 16
    c2h = max(16, ch0 // 4, reg_max * 4)
    c3h = max(ch0, num_classes)
    P["cv2"] = [pg.conv(ch0, c2h, 3), pg.conv(c2h, c2h, 3),
                pg.conv(c2h, 4 * reg_max, 1)]
    P["cv3"] = [pg.conv(ch0, c3h, 3), pg.conv(c3h, c3h, 3),
                pg.conv(c3h, num_classes, 1)]
    return P


# ----------------------------------------------------------------------------
# full forward
# ----------------------------------------------------------------------------
def yolo_body_forward(x_nchw, P, base, num_classes, reg_max=16):
    # NHWC + bf16 activations everywhere internally
    x = jnp.transpose(x_nchw, (0, 2, 3, 1)).astype(jnp.bfloat16)

    # synthetic backbone -> feat0 (S/4,2b) feat1 (S/8,4b) feat2 (S/16,8b) feat3 (S/32,16b)
    f = x
    feats = []
    for cp in P["backbone"]:
        f = conv_block(f, cp, s=2)
        feats.append(f)
    feat0, feat1, feat2, feat3 = feats[1], feats[2], feats[3], feats[4]

    feat3 = conv_block(feat3, P["adapter"])

    c5_1 = csfa_forward(feat3, feat2, P["csfa1"], ch1=base * 16)
    c5_1 = conv_block(c5_1, P["conv_for_csfa1"])

    c4_1 = csfa_forward(feat2, feat1, P["csfa2"], ch1=base * 8)
    c4_1 = conv_block(c4_1, P["conv_for_csfa2"])

    f1_up = upsample2(feat1)
    c3_1 = conv_block(jnp.concatenate([feat0, f1_up], axis=-1),
                      P["conv_for_cat1"])

    c5_2 = csfa_forward(c5_1, c4_1, P["csfa3"], ch1=base * 16)
    c5_2 = conv_block(c5_2, P["conv_for_csfa3"])

    c4_1_up = upsample2(c4_1)
    c4_2 = conv_block(jnp.concatenate([c3_1, c4_1_up], axis=-1),
                      P["conv_for_cat2"])

    c5_2_up = upsample2(c5_2)
    c5_3 = conv_block(jnp.concatenate([c4_2, c5_2_up], axis=-1),
                      P["conv_for_cat3"])

    # PatchAttention(feat0, feat3): feat0 is K/V source, feat3 is query source
    c2 = cross_attention_forward(feat3, feat0, P["pa"])
    c2 = conv_block(c2, P["conv_for_pa"])

    Pout = jnp.concatenate([c2, c3_1, c4_2, c5_3], axis=-1)
    Pout = conv_block(Pout, P["conv_all"])

    # detection head (single level) — final 1x1 convs stay f32
    y2 = conv_block(Pout, P["cv2"][0])
    y2 = conv_block(y2, P["cv2"][1])
    y2 = conv2d_nhwc(y2, P["cv2"][2]["w"], P["cv2"][2]["b"],
                     act="none", out_dtype=jnp.float32)
    y3 = conv_block(Pout, P["cv3"][0])
    y3 = conv_block(y3, P["cv3"][1])
    y3 = conv2d_nhwc(y3, P["cv3"][2]["w"], P["cv3"][2]["b"],
                     act="none", out_dtype=jnp.float32)
    xhead = jnp.transpose(jnp.concatenate([y2, y3], axis=-1),
                          (0, 3, 1, 2))              # NCHW like PyTorch return

    anchor_points, stride_tensor = make_anchors([xhead], [4.0], 0.5)
    anchors = anchor_points.T        # (2, A)
    strides = stride_tensor.T        # (1, A)

    b = xhead.shape[0]
    no = num_classes + reg_max * 4
    flat = xhead.reshape(b, no, -1)
    box, cls = flat[:, :reg_max * 4], flat[:, reg_max * 4:]
    dbox = dfl_pallas(box, reg_max)
    return dbox, cls, [xhead], anchors, strides


# ----------------------------------------------------------------------------
if __name__ == "__main__":
    num_classes = 80
    phi = "n"                                # base_channels = 16, deep_mul = 1.0
    base = int(0.25 * 64)
    deep_mul = 1.0
    input_shape = [128, 128]                 # small test size (see header note)
    batch = 1

    params = build_params(seed=0, base=base, deep_mul=deep_mul,
                          num_classes=num_classes, input_shape=input_shape)

    x = jax.random.normal(jax.random.PRNGKey(0),
                          (batch, 3, input_shape[0], input_shape[1]),
                          jnp.float32)

    dbox, cls, xlist, anchors, strides = yolo_body_forward(
        x, params, base=base, num_classes=num_classes)
    jax.block_until_ready((dbox, cls, xlist, anchors, strides))

    A = (input_shape[0] // 4) * (input_shape[1] // 4)
    assert dbox.shape == (batch, 4, A)
    assert cls.shape == (batch, num_classes, A)
    assert xlist[0].shape == (batch, num_classes + 64,
                              input_shape[0] // 4, input_shape[1] // 4)
    assert anchors.shape == (2, A) and strides.shape == (1, A)
    assert bool(jnp.all(jnp.isfinite(dbox))) and bool(jnp.all(jnp.isfinite(cls)))
    print("KERNEL_OK")
</pallas_src>

<mosaic_0001>
module attributes {stable_mosaic.version = 11 : i64} {
  func.func @_mm_kernel(%arg0: i32, %arg1: i32, %arg2: memref<1024x27xbf16, #tpu.memory_space<vmem>>, %arg3: memref<27x16xbf16, #tpu.memory_space<vmem>>, %arg4: memref<1x16xf32, #tpu.memory_space<vmem>>, %arg5: memref<1024x16xbf16, #tpu.memory_space<vmem>>) attributes {dimension_semantics = [#tpu.dimension_semantics<parallel>, #tpu.dimension_semantics<parallel>], iteration_bounds = array<i64: 4, 1>, scalar_prefetch = 0 : i64, scratch_operands = 0 : i64, tpu.core_type = #tpu.core_type<tc>, window_params = [{transform_indices = @transform_0, window_bounds = array<i64: 1024, 27>}, {transform_indices = @transform_1, window_bounds = array<i64: 27, 16>}, {transform_indices = @transform_2, window_bounds = array<i64: 1, 16>}, {transform_indices = @transform_3, window_bounds = array<i64: 1024, 16>}]} {
    %c0 = arith.constant 0 : index
    %c0_0 = arith.constant 0 : index
    %0 = vector.load %arg2[%c0, %c0_0] : memref<1024x27xbf16, #tpu.memory_space<vmem>>, vector<1024x27xbf16>
    %c0_1 = arith.constant 0 : index
    %c0_2 = arith.constant 0 : index
    %1 = vector.load %arg3[%c0_1, %c0_2] : memref<27x16xbf16, #tpu.memory_space<vmem>>, vector<27x16xbf16>
    %cst = arith.constant dense<0.000000e+00> : vector<1024x16xf32>
    %2 = tpu.matmul %0, %1, %cst {dimension_numbers = #tpu.dot_dimension_numbers<[1], [0], [0], [1], [0, 0, 1, 1], [], []>} : vector<1024x27xbf16>, vector<27x16xbf16>, vector<1024x16xf32> -> vector<1024x16xf32>
    %c0_3 = arith.constant 0 : index
    %c0_4 = arith.constant 0 : index
    %3 = vector.load %arg4[%c0_3, %c0_4] : memref<1x16xf32, #tpu.memory_space<vmem>>, vector<1x16xf32>
    %4 = vector.broadcast %3 : vector<1x16xf32> to vector<1024x16xf32>
    %5 = arith.addf %2, %4 : vector<1024x16xf32>
    %cst_5 = arith.constant 0.000000e+00 : f32
    %6 = vector.broadcast %cst_5 : f32 to vector<1024x16xf32>
    %7 = arith.subf %6, %5 : vector<1024x16xf32>
    %8 = math.exp %7 : vector<1024x16xf32>
    %cst_6 = arith.constant 1.000000e+00 : f32
    %9 = vector.broadcast %cst_6 : f32 to vector<1024x16xf32>
    %10 = arith.addf %9, %8 : vector<1024x16xf32>
    %11 = tpu.reciprocal %10 {approx = true} : vector<1024x16xf32> -> vector<1024x16xf32>
    %12 = arith.mulf %5, %11 : vector<1024x16xf32>
    %13 = arith.truncf %12 : vector<1024x16xf32> to vector<1024x16xbf16>
    %c0_7 = arith.constant 0 : index
    %c0_8 = arith.constant 0 : index
    %14 = vector.load %arg5[%c0_7, %c0_8] : memref<1024x16xbf16, #tpu.memory_space<vmem>>, vector<1024x16xbf16>
    tpu.vector_store %arg5[%c0_7, %c0_8], %13 {strides = array<i32>} : memref<1024x16xbf16, #tpu.memory_space<vmem>>, vector<1024x16xbf16>,
    return
  }
  func.func @transform_0(%arg0: i32, %arg1: i32) -> (i32, i32) {
    %c0_i32 = arith.constant 0 : i32
    %c0_i32_0 = arith.constant 0 : i32
    return %arg0, %c0_i32 : i32, i32
  }
  func.func @transform_1(%arg0: i32, %arg1: i32) -> (i32, i32) {
    %c0_i32 = arith.constant 0 : i32
    %c0_i32_0 = arith.constant 0 : i32
    return %c0_i32, %arg1 : i32, i32
  }
  func.func @transform_2(%arg0: i32, %arg1: i32) -> (i32, i32) {
    %c0_i32 = arith.constant 0 : i32
    %c0_i32_0 = arith.constant 0 : i32
    return %c0_i32, %arg1 : i32, i32
  }
  func.func @transform_3(%arg0: i32, %arg1: i32) -> (i32, i32) {
    %c0_i32 = arith.constant 0 : i32
    return %arg0, %arg1 : i32, i32
  }
}

</mosaic_0001>

<llo_original>
// kernel: tpu_custom_call.1
$region0: #{tpu_custom_call.1}
  #allocation0 [shape = 'u32[]', space=smem, size = 0x4, offset = 0x4, fixed_abs, tag = 'smem constant byte address 0x4 - core index']
  #allocation1 [shape = 'u32[144,128]{1,0:T(1,128)}', space=vmem, size = 0x12000, scoped, tag = 'internal scratch']
  %s0 = inlined_call_operand.vmem [shape: bf16[4096,27], index: 0, kind: input, shape index: {}]
  %s1 = inlined_call_operand.vmem [shape: bf16[27,16], index: 1, kind: input, shape index: {}]
  %s2 = inlined_call_operand.vmem [shape: f32[1,16], index: 2, kind: input, shape index: {}]
  %s3 = inlined_call_operand.vmem [shape: bf16[4096,16], index: 3, kind: output, shape index: {}]
  %s4 = sld [smem:[#allocation0]]
  $region45: #{tpu_custom_call.1} parent=0
    _
  %s6 = ssub.s32 1, %s4
  %s7 = scalar_select 0, %s6, %s4
  loop: start=0, step=1, limit=6
  $region2: #{tpu_custom_call.1} parent=0 // loop_pre_header
    _
  $region3: #{tpu_custom_call.1} parent=0 // loop_header
    %s9 = sphi 0, %s13
    %p10 = scmp.ge.s32.totalorder %s9, 6
    %s16 = sphi 0, %s28
    %s17 = sphi 0, %s24
    %s18 = sphi 0, %s16
    %s19 = sphi 0, %s17
    %s20 = sphi 0, %s18
    %s21 = sphi 0, %s19
    %s31 = sphi 0, %s33
    %s34 = sphi 0, %s31
    %s35 = sphi 0, %s34
    %s51 = sphi 0, %s35
    %s57 = sphi 0, %s59
    %s60 = sphi 0, %s57
    %s61 = sphi 0, %s60
    %s77 = sphi 0, %s61
    %s83 = sphi 0, %s85
    %s86 = sphi 0, %s83
    %s87 = sphi 0, %s86
    %s103 = sphi 0, %s87
    %s111 = sphi 0, %s113
    %s114 = sphi 0, %s111
    %s115 = sphi 0, %s114
    %s131 = sphi 0, %s115
  $region4: #{tpu_custom_call.1} parent=0 // loop_header_branch
    %12 = sbr.rel (%p10) target = $region8
  $region5: #{tpu_custom_call.1} parent=0 // loop_body
    %s14 = ssub.s32 %s9, 1
    %s15 = ssub.s32 %s9, 2
    %s22 = sadd.s32 1, %s17
    %p23 = scmp.ge.s32.totalorder %s22, 1
    %s24 = scalar_select %p23, 0, %s22
    %s25 = sadd.s32 1, %s16
    %s26 = scalar_select %p23, %s25, %s16
    %p27 = scmp.ge.s32.totalorder %s26, 4
    %s28 = scalar_select %p27, 0, %s26
    %s29 = ssub.s32 %s16, %s28
    %p30 = scmp.eq.s32.totalorder %s29, 0
    %s32 = sadd.s32 %s31, 1
    %s33 = scalar_select %p30, %s31, %s32
    %p36 = pneg %p30
    %p37 = scmp.eq.s32.totalorder %s9, 3
    %p38 = por %p36, %p37
    %p39 = scmp.ne.s32.totalorder %s31, %s34
    %p40 = scmp.eq.s32.totalorder %s9, 0
    %p41 = por %p39, %p40
    %p42 = scmp.ne.s32.totalorder %s31, %s34
    %p43 = scmp.eq.s32.totalorder %s14, 3
    %p44 = por %p42, %p43
    %p45 = scmp.ne.s32.totalorder %s34, %s35
    %p46 = scmp.eq.s32.totalorder %s14, 0
    %p47 = por %p45, %p46
    %p48 = scmp.ne.s32.totalorder %s34, %s35
    %p49 = scmp.eq.s32.totalorder %s15, 3
    %p50 = por %p48, %p49
    %p52 = scmp.ne.s32.totalorder %s35, %s51
    %p53 = scmp.eq.s32.totalorder %s15, 0
    %p54 = por %p52, %p53
    %s55 = ssub.s32 %s17, %s24
    %p56 = scmp.eq.s32.totalorder %s55, 0
    %s58 = sadd.s32 %s57, 1
    %s59 = scalar_select %p56, %s57, %s58
    %p62 = pneg %p56
    %p63 = scmp.eq.s32.totalorder %s9, 3
    %p64 = por %p62, %p63
    %p65 = scmp.ne.s32.totalorder %s57, %s60
    %p66 = scmp.eq.s32.totalorder %s9, 0
    %p67 = por %p65, %p66
    %p68 = scmp.ne.s32.totalorder %s57, %s60
    %p69 = scmp.eq.s32.totalorder %s14, 3
    %p70 = por %p68, %p69
    %p71 = scmp.ne.s32.totalorder %s60, %s61
    %p72 = scmp.eq.s32.totalorder %s14, 0
    %p73 = por %p71, %p72
    %p74 = scmp.ne.s32.totalorder %s60, %s61
    %p75 = scmp.eq.s32.totalorder %s15, 3
    %p76 = por %p74, %p75
    %p78 = scmp.ne.s32.totalorder %s61, %s77
    %p79 = scmp.eq.s32.totalorder %s15, 0
    %p80 = por %p78, %p79
    %s81 = ssub.s32 %s17, %s24
    %p82 = scmp.eq.s32.totalorder %s81, 0
    %s84 = sadd.s32 %s83, 1
    %s85 = scalar_select %p82, %s83, %s84
    %p88 = pneg %p82
    %p89 = scmp.eq.s32.totalorder %s9, 3
    %p90 = por %p88, %p89
    %p91 = scmp.ne.s32.totalorder %s83, %s86
    %p92 = scmp.eq.s32.totalorder %s9, 0
    %p93 = por %p91, %p92
    %p94 = scmp.ne.s32.totalorder %s83, %s86
    %p95 = scmp.eq.s32.totalorder %s14, 3
    %p96 = por %p94, %p95
    %p97 = scmp.ne.s32.totalorder %s86, %s87
    %p98 = scmp.eq.s32.totalorder %s14, 0
    %p99 = por %p97, %p98
    %p100 = scmp.ne.s32.totalorder %s86, %s87
    %p101 = scmp.eq.s32.totalorder %s15, 3
    %p102 = por %p100, %p101
    %p104 = scmp.ne.s32.totalorder %s87, %s103
    %p105 = scmp.eq.s32.totalorder %s15, 0
    %p106 = por %p104, %p105
    %s107 = ssub.s32 %s16, %s28
    %s108 = ssub.s32 %s17, %s24
    %s109 = sor.u32 %s107, %s108
    %p110 = scmp.eq.s32.totalorder %s109, 0
    %s112 = sadd.s32 %s111, 1
    %s113 = scalar_select %p110, %s111, %s112
    %p116 = pneg %p110
    %p117 = scmp.eq.s32.totalorder %s9, 3
    %p118 = por %p116, %p117
    %p119 = scmp.ne.s32.totalorder %s111, %s114
    %p120 = scmp.eq.s32.totalorder %s9, 0
    %p121 = por %p119, %p120
    %p122 = scmp.ne.s32.totalorder %s111, %s114
    %p123 = scmp.eq.s32.totalorder %s14, 3
    %p124 = por %p122, %p123
    %p125 = scmp.ne.s32.totalorder %s114, %s115
    %p126 = scmp.eq.s32.totalorder %s14, 0
    %p127 = por %p125, %p126
    %p128 = scmp.ne.s32.totalorder %s114, %s115
    %p129 = scmp.eq.s32.totalorder %s15, 3
    %p130 = por %p128, %p129
    %p132 = scmp.ne.s32.totalorder %s115, %s131
    %p133 = scmp.eq.s32.totalorder %s15, 0
    %p134 = por %p132, %p133
    %p135 = scmp.le.s32.totalorder 1, %s9
    %p136 = scmp.lt.s32.totalorder %s9, 5
    %p137 = pnand %p135, %p136
    %p138 = pneg %p137
    // Predicated region
    $region9: #{tpu_custom_call.1} parent=5 // pred_check
      _
    $region10: #{tpu_custom_call.1} parent=5 // pred_check_branch
      %140 = sbr.rel (%p137) target = $region12
    $region11: #{tpu_custom_call.1} parent=5 // pred_region
      %s141 = ssub.s32 %s9, 1
      // Predicated region
      $region13: #{tpu_custom_call.1} parent=11 // pred_check
        %p142 = pneg %p73
      $region14: #{tpu_custom_call.1} parent=11 // pred_check_branch
        %144 = sbr.rel (%p142) target = $region16
      $region15: #{tpu_custom_call.1} parent=11 // pred_region
        %p145 = scmp.lt.s32.totalorder %s19, 0
        %s146 = scalar_select %p145, %s19, 0
        %s147 = smul.addr %s146, 4
        %s148 = scalar_lea.vmem %s1, %s147
      $region16: #{tpu_custom_call.1} parent=11 // pred_fallthru
        _
      // Predicated region
      $region17: #{tpu_custom_call.1} parent=11 // pred_check
        %p149 = pneg %p99
      $region18: #{tpu_custom_call.1} parent=11 // pred_check_branch
        %151 = sbr.rel (%p149) target = $region20
      $region19: #{tpu_custom_call.1} parent=11 // pred_region
        %p152 = scmp.lt.s32.totalorder %s19, 0
        %s153 = scalar_select %p152, %s19, 0
        %s154 = scalar_lea.vmem %s2, %s153
      $region20: #{tpu_custom_call.1} parent=11 // pred_fallthru
        _
    $region12: #{tpu_custom_call.1} parent=5 // pred_fallthru
      _
    %p155 = scmp.lt.s32.totalorder %s9, 4
    // Predicated region
    $region21: #{tpu_custom_call.1} parent=5 // pred_check
      %p156 = pneg %p155
    $region22: #{tpu_custom_call.1} parent=5 // pred_check_branch
      %158 = sbr.rel (%p156) target = $region24
    $region23: #{tpu_custom_call.1} parent=5 // pred_region
      // Predicated region
      $region25: #{tpu_custom_call.1} parent=23 // pred_check
        %p159 = pneg %p41
      $region26: #{tpu_custom_call.1} parent=23 // pred_check_branch
        %161 = sbr.rel (%p159) target = $region28
      $region27: #{tpu_custom_call.1} parent=23 // pred_region
        %s162 = smul.u32 128, %s16
        %p163 = scmp.lt.s32.totalorder %s162, 511
        %s164 = scalar_select %p163, %s162, 511
        %s165 = smul.addr %s164, 4
        %s166 = scalar_lea.vmem %s0, %s165
        %s167 = smul.u32 128, %s16
      $region28: #{tpu_custom_call.1} parent=23 // pred_fallthru
        _
    $region24: #{tpu_custom_call.1} parent=5 // pred_fallthru
      _
    %p168 = scmp.le.s32.totalorder 1, %s9
    %p169 = scmp.lt.s32.totalorder %s9, 5
    %p170 = pnand %p168, %p169
    %p171 = pneg %p170
    // Predicated region
    $region29: #{tpu_custom_call.1} parent=5 // pred_check
      _
    $region30: #{tpu_custom_call.1} parent=5 // pred_check_branch
      %173 = sbr.rel (%p170) target = $region32
    $region31: #{tpu_custom_call.1} parent=5 // pred_region
      %s174 = ssub.s32 %s9, 1
      %s175 = smul.u32 128, %s18
      %p176 = scmp.lt.s32.totalorder %s175, 511
      %s177 = scalar_select %p176, %s175, 511
      %s178 = smul.addr %s177, 4
      %s179 = scalar_lea.vmem %s0, %s178
      %p180 = pneg %p47
      %p181 = pneg %p44
      %p182 = scmp.lt.s32.totalorder %s19, 0
      %s183 = scalar_select %p182, %s19, 0
      %s184 = smul.addr %s183, 4
      %s185 = scalar_lea.vmem %s1, %s184
      %p186 = pneg %p73
      %p187 = pneg %p70
      %p188 = scmp.lt.s32.totalorder %s19, 0
      %s189 = scalar_select %p188, %s19, 0
      %s190 = scalar_lea.vmem %s2, %s189
      %p191 = pneg %p99
      %p192 = pneg %p96
      %p193 = pneg %p127
      %p194 = pneg %p124
      %s195 = smul.u32 128, %s18
      %p196 = scmp.lt.s32.totalorder %s195, 511
      %s197 = scalar_select %p196, %s195, 511
      %p198 = scmp.lt.s32.totalorder %s19, 0
      %s199 = scalar_select %p198, %s19, 0
      %s200 = sadd.s32 %s199, %s197
      %s201 = smul.addr %s200, 4
      %s202 = scalar_lea.vmem %s3, %s201
      %s203 = smul.u32 128, %s18
      %p204 = scmp.lt.s32.totalorder %s203, 511
      %s205 = scalar_select %p204, %s203, 511
      %s206 = smul.addr %s205, 4
      %s207 = scalar_lea.vmem %s0, %s206
      %s208 = smul.u32 128, %s18
      %p209 = scmp.lt.s32.totalorder %s19, 0
      %s210 = scalar_select %p209, %s19, 0
      %s211 = smul.addr %s210, 4
      %s212 = scalar_lea.vmem %s1, %s211
      %p213 = scmp.lt.s32.totalorder %s19, 0
      %s214 = scalar_select %p213, %s19, 0
      %s215 = scalar_lea.vmem %s2, %s214
      %s216 = smul.u32 128, %s18
      %p217 = scmp.lt.s32.totalorder %s216, 511
      %s218 = scalar_select %p217, %s216, 511
      %p219 = scmp.lt.s32.totalorder %s19, 0
      %s220 = scalar_select %p219, %s19, 0
      %s221 = sadd.s32 %s220, %s218
      %s222 = smul.addr %s221, 4
      %s223 = scalar_lea.vmem %s3, %s222
      %s224 = smul.u32 128, %s18
      %v226 = vld [vmem:[%s207] sm:$0xf]
      %v227 = vld [vmem:[%s207 + $0x4] sm:$0xf]
      %v228 = vld [vmem:[%s207 + $0x8] sm:$0xf]
      %v229 = vld [vmem:[%s207 + $0xc] sm:$0xf]
      %v230 = vld [vmem:[%s207 + $0x10] sm:$0xf]
      %v231 = vld [vmem:[%s207 + $0x14] sm:$0xf]
      %v232 = vld [vmem:[%s207 + $0x18] sm:$0xf]
      %v233 = vld [vmem:[%s207 + $0x1c] sm:$0xf]
      %v234 = vld [vmem:[%s207 + $0x20] sm:$0xf]
      %v235 = vld [vmem:[%s207 + $0x24] sm:$0xf]
      %v236 = vld [vmem:[%s207 + $0x28] sm:$0xf]
      %v237 = vld [vmem:[%s207 + $0x2c] sm:$0xf]
      %v238 = vld [vmem:[%s207 + $0x30] sm:$0xf]
      %v239 = vld [vmem:[%s207 + $0x34] sm:$0xf]
      %v240 = vld [vmem:[%s207 + $0x38] sm:$0xf]
      %v241 = vld [vmem:[%s207 + $0x3c] sm:$0xf]
      %v242 = vld [vmem:[%s207 + $0x40] sm:$0xf]
      %v243 = vld [vmem:[%s207 + $0x44] sm:$0xf]
      %v244 = vld [vmem:[%s207 + $0x48] sm:$0xf]
      %v245 = vld [vmem:[%s207 + $0x4c] sm:$0xf]
      %v246 = vld [vmem:[%s207 + $0x50] sm:$0xf]
      %v247 = vld [vmem:[%s207 + $0x54] sm:$0xf]
      %v248 = vld [vmem:[%s207 + $0x58] sm:$0xf]
      %v249 = vld [vmem:[%s207 + $0x5c] sm:$0xf]
      %v250 = vld [vmem:[%s207 + $0x60] sm:$0xf]
      %v251 = vld [vmem:[%s207 + $0x64] sm:$0xf]
      %v252 = vld [vmem:[%s207 + $0x68] sm:$0xf]
      %v253 = vld [vmem:[%s207 + $0x6c] sm:$0xf]
      %v254 = vld [vmem:[%s207 + $0x70] sm:$0xf]
      %v255 = vld [vmem:[%s207 + $0x74] sm:$0xf]
      %v256 = vld [vmem:[%s207 + $0x78] sm:$0xf]
      %v257 = vld [vmem:[%s207 + $0x7c] sm:$0xf]
      %v258 = vld [vmem:[%s207 + $0x80] sm:$0xf]
      %v259 = vld [vmem:[%s207 + $0x84] sm:$0xf]
      %v260 = vld [vmem:[%s207 + $0x88] sm:$0xf]
      %v261 = vld [vmem:[%s207 + $0x8c] sm:$0xf]
      %v262 = vld [vmem:[%s207 + $0x90] sm:$0xf]
      %v263 = vld [vmem:[%s207 + $0x94] sm:$0xf]
      %v264 = vld [vmem:[%s207 + $0x98] sm:$0xf]
      %v265 = vld [vmem:[%s207 + $0x9c] sm:$0xf]
      %v266 = vld [vmem:[%s207 + $0xa0] sm:$0xf]
      %v267 = vld [vmem:[%s207 + $0xa4] sm:$0xf]
      %v268 = vld [vmem:[%s207 + $0xa8] sm:$0xf]
      %v269 = vld [vmem:[%s207 + $0xac] sm:$0xf]
      %v270 = vld [vmem:[%s207 + $0xb0] sm:$0xf]
      %v271 = vld [vmem:[%s207 + $0xb4] sm:$0xf]
      %v272 = vld [vmem:[%s207 + $0xb8] sm:$0xf]
      %v273 = vld [vmem:[%s207 + $0xbc] sm:$0xf]
      %v274 = vld [vmem:[%s207 + $0xc0] sm:$0xf]
      %v275 = vld [vmem:[%s207 + $0xc4] sm:$0xf]
      %v276 = vld [vmem:[%s207 + $0xc8] sm:$0xf]
      %v277 = vld [vmem:[%s207 + $0xcc] sm:$0xf]
      %v278 = vld [vmem:[%s207 + $0xd0] sm:$0xf]
      %v279 = vld [vmem:[%s207 + $0xd4] sm:$0xf]
      %v280 = vld [vmem:[%s207 + $0xd8] sm:$0xf]
      %v281 = vld [vmem:[%s207 + $0xdc] sm:$0xf]
      %v282 = vld [vmem:[%s207 + $0xe0] sm:$0xf]
      %v283 = vld [vmem:[%s207 + $0xe4] sm:$0xf]
      %v284 = vld [vmem:[%s207 + $0xe8] sm:$0xf]
      %v285 = vld [vmem:[%s207 + $0xec] sm:$0xf]
      %v286 = vld [vmem:[%s207 + $0xf0] sm:$0xf]
      %v287 = vld [vmem:[%s207 + $0xf4] sm:$0xf]
      %v288 = vld [vmem:[%s207 + $0xf8] sm:$0xf]
      %v289 = vld [vmem:[%s207 + $0xfc] sm:$0xf]
      %v290 = vld [vmem:[%s207 + $0x100] sm:$0xf]
      %v291 = vld [vmem:[%s207 + $0x104] sm:$0xf]
      %v292 = vld [vmem:[%s207 + $0x108] sm:$0xf]
      %v293 = vld [vmem:[%s207 + $0x10c] sm:$0xf]
      %v294 = vld [vmem:[%s207 + $0x110] sm:$0xf]
      %v295 = vld [vmem:[%s207 + $0x114] sm:$0xf]
      %v296 = vld [vmem:[%s207 + $0x118] sm:$0xf]
      %v297 = vld [vmem:[%s207 + $0x11c] sm:$0xf]
      %v298 = vld [vmem:[%s207 + $0x120] sm:$0xf]
      %v299 = vld [vmem:[%s207 + $0x124] sm:$0xf]
      %v300 = vld [vmem:[%s207 + $0x128] sm:$0xf]
      %v301 = vld [vmem:[%s207 + $0x12c] sm:$0xf]
      %v302 = vld [vmem:[%s207 + $0x130] sm:$0xf]
      %v303 = vld [vmem:[%s207 + $0x134] sm:$0xf]
      %v304 = vld [vmem:[%s207 + $0x138] sm:$0xf]
      %v305 = vld [vmem:[%s207 + $0x13c] sm:$0xf]
      %v306 = vld [vmem:[%s207 + $0x140] sm:$0xf]
      %v307 = vld [vmem:[%s207 + $0x144] sm:$0xf]
      %v308 = vld [vmem:[%s207 + $0x148] sm:$0xf]
      %v309 = vld [vmem:[%s207 + $0x14c] sm:$0xf]
      %v310 = vld [vmem:[%s207 + $0x150] sm:$0xf]
      %v311 = vld [vmem:[%s207 + $0x154] sm:$0xf]
      %v312 = vld [vmem:[%s207 + $0x158] sm:$0xf]
      %v313 = vld [vmem:[%s207 + $0x15c] sm:$0xf]
      %v314 = vld [vmem:[%s207 + $0x160] sm:$0xf]
      %v315 = vld [vmem:[%s207 + $0x164] sm:$0xf]
      %v316 = vld [vmem:[%s207 + $0x168] sm:$0xf]
      %v317 = vld [vmem:[%s207 + $0x16c] sm:$0xf]
      %v318 = vld [vmem:[%s207 + $0x170] sm:$0xf]
      %v319 = vld [vmem:[%s207 + $0x174] sm:$0xf]
      %v320 = vld [vmem:[%s207 + $0x178] sm:$0xf]
      %v321 = vld [vmem:[%s207 + $0x17c] sm:$0xf]
      %v322 = vld [vmem:[%s207 + $0x180] sm:$0xf]
      %v323 = vld [vmem:[%s207 + $0x184] sm:$0xf]
      %v324 = vld [vmem:[%s207 + $0x188] sm:$0xf]
      %v325 = vld [vmem:[%s207 + $0x18c] sm:$0xf]
      %v326 = vld [vmem:[%s207 + $0x190] sm:$0xf]
      %v327 = vld [vmem:[%s207 + $0x194] sm:$0xf]
      %v328 = vld [vmem:[%s207 + $0x198] sm:$0xf]
      %v329 = vld [vmem:[%s207 + $0x19c] sm:$0xf]
      %v330 = vld [vmem:[%s207 + $0x1a0] sm:$0xf]
      %v331 = vld [vmem:[%s207 + $0x1a4] sm:$0xf]
      %v332 = vld [vmem:[%s207 + $0x1a8] sm:$0xf]
      %v333 = vld [vmem:[%s207 + $0x1ac] sm:$0xf]
      %v334 = vld [vmem:[%s207 + $0x1b0] sm:$0xf]
      %v335 = vld [vmem:[%s207 + $0x1b4] sm:$0xf]
      %v336 = vld [vmem:[%s207 + $0x1b8] sm:$0xf]
      %v337 = vld [vmem:[%s207 + $0x1bc] sm:$0xf]
      %v338 = vld [vmem:[%s207 + $0x1c0] sm:$0xf]
      %v339 = vld [vmem:[%s207 + $0x1c4] sm:$0xf]
      %v340 = vld [vmem:[%s207 + $0x1c8] sm:$0xf]
      %v341 = vld [vmem:[%s207 + $0x1cc] sm:$0xf]
      %v342 = vld [vmem:[%s207 + $0x1d0] sm:$0xf]
      %v343 = vld [vmem:[%s207 + $0x1d4] sm:$0xf]
      %v344 = vld [vmem:[%s207 + $0x1d8] sm:$0xf]
      %v345 = vld [vmem:[%s207 + $0x1dc] sm:$0xf]
      %v346 = vld [vmem:[%s207 + $0x1e0] sm:$0xf]
      %v347 = vld [vmem:[%s207 + $0x1e4] sm:$0xf]
      %v348 = vld [vmem:[%s207 + $0x1e8] sm:$0xf]
      %v349 = vld [vmem:[%s207 + $0x1ec] sm:$0xf]
      %v350 = vld [vmem:[%s207 + $0x1f0] sm:$0xf]
      %v351 = vld [vmem:[%s207 + $0x1f4] sm:$0xf]
      %v352 = vld [vmem:[%s207 + $0x1f8] sm:$0xf]
      %v353 = vld [vmem:[%s207 + $0x1fc] sm:$0xf]
      %v354 = vld [vmem:[%s212] sm:$0xf]
      %v355 = vld [vmem:[%s212 + $0x4] sm:$0xf]
      %v356 = vld [vmem:[%s212 + $0x8] sm:$0xf]
      %v357 = vld [vmem:[%s212 + $0xc] sm:$0x3]
      %v358 = vld [vmem:[%s215] sm:$0x1]
      %v360 = vlaneseq
      %v361 = vshrl.u32 %v360, 7
      %v362 = vsub.s32 0, %v361
      %v363 = vrot.slane %v358, %v362
      %v493 = vunpack.c.l.b16 %v226
      %v494 = vunpack.c.l.b16 %v227
      %v495 = vunpack.c.l.b16 %v228
      %v496 = vunpack.c.l.b16 %v229
      %v497 = vunpack.c.l.b16 %v230
      %v498 = vunpack.c.l.b16 %v231
      %v499 = vunpack.c.l.b16 %v232
      %v500 = vunpack.c.l.b16 %v233
      %v501 = vunpack.c.l.b16 %v234
      %v502 = vunpack.c.l.b16 %v235
      %v503 = vunpack.c.l.b16 %v236
      %v504 = vunpack.c.l.b16 %v237
      %v505 = vunpack.c.l.b16 %v238
      %v506 = vunpack.c.l.b16 %v239
      %v507 = vunpack.c.l.b16 %v240
      %v508 = vunpack.c.l.b16 %v241
      %v509 = vunpack.c.l.b16 %v242
      %v510 = vunpack.c.l.b16 %v243
      %v511 = vunpack.c.l.b16 %v244
      %v512 = vunpack.c.l.b16 %v245
      %v513 = vunpack.c.l.b16 %v246
      %v514 = vunpack.c.l.b16 %v247
      %v515 = vunpack.c.l.b16 %v248
      %v516 = vunpack.c.l.b16 %v249
      %v517 = vunpack.c.l.b16 %v250
      %v518 = vunpack.c.l.b16 %v251
      %v519 = vunpack.c.l.b16 %v252
      %v520 = vunpack.c.l.b16 %v253
      %v521 = vunpack.c.l.b16 %v254
      %v522 = vunpack.c.l.b16 %v255
      %v523 = vunpack.c.l.b16 %v256
      %v524 = vunpack.c.l.b16 %v257
      %v525 = vunpack.c.l.b16 %v258
      %v526 = vunpack.c.l.b16 %v259
      %v527 = vunpack.c.l.b16 %v260
      %v528 = vunpack.c.l.b16 %v261
      %v529 = vunpack.c.l.b16 %v262
      %v530 = vunpack.c.l.b16 %v263
      %v531 = vunpack.c.l.b16 %v264
      %v532 = vunpack.c.l.b16 %v265
      %v533 = vunpack.c.l.b16 %v266
      %v534 = vunpack.c.l.b16 %v267
      %v535 = vunpack.c.l.b16 %v268
      %v536 = vunpack.c.l.b16 %v269
      %v537 = vunpack.c.l.b16 %v270
      %v538 = vunpack.c.l.b16 %v271
      %v539 = vunpack.c.l.b16 %v272
      %v540 = vunpack.c.l.b16 %v273
      %v541 = vunpack.c.l.b16 %v274
      %v542 = vunpack.c.l.b16 %v275
      %v543 = vunpack.c.l.b16 %v276
      %v544 = vunpack.c.l.b16 %v277
      %v545 = vunpack.c.l.b16 %v278
      %v546 = vunpack.c.l.b16 %v279
      %v547 = vunpack.c.l.b16 %v280
      %v548 = vunpack.c.l.b16 %v281
      %v549 = vunpack.c.l.b16 %v282
      %v550 = vunpack.c.l.b16 %v283
      %v551 = vunpack.c.l.b16 %v284
      %v552 = vunpack.c.l.b16 %v285
      %v553 = vunpack.c.l.b16 %v286
      %v554 = vunpack.c.l.b16 %v287
      %v555 = vunpack.c.l.b16 %v288
      %v556 = vunpack.c.l.b16 %v289
      %v557 = vunpack.c.l.b16 %v290
      %v558 = vunpack.c.l.b16 %v291
      %v559 = vunpack.c.l.b16 %v292
      %v560 = vunpack.c.l.b16 %v293
      %v561 = vunpack.c.l.b16 %v294
      %v562 = vunpack.c.l.b16 %v295
      %v563 = vunpack.c.l.b16 %v296
      %v564 = vunpack.c.l.b16 %v297
      %v565 = vunpack.c.l.b16 %v298
      %v566 = vunpack.c.l.b16 %v299
      %v567 = vunpack.c.l.b16 %v300
      %v568 = vunpack.c.l.b16 %v301
      %v569 = vunpack.c.l.b16 %v302
      %v570 = vunpack.c.l.b16 %v303
      %v571 = vunpack.c.l.b16 %v304
      %v572 = vunpack.c.l.b16 %v305
      %v573 = vunpack.c.l.b16 %v306
      %v574 = vunpack.c.l.b16 %v307
      %v575 = vunpack.c.l.b16 %v308
      %v576 = vunpack.c.l.b16 %v309
      %v577 = vunpack.c.l.b16 %v310
      %v578 = vunpack.c.l.b16 %v311
      %v579 = vunpack.c.l.b16 %v312
      %v580 = vunpack.c.l.b16 %v313
      %v581 = vunpack.c.l.b16 %v314
      %v582 = vunpack.c.l.b16 %v315
      %v583 = vunpack.c.l.b16 %v316
      %v584 = vunpack.c.l.b16 %v317
      %v585 = vunpack.c.l.b16 %v318
      %v586 = vunpack.c.l.b16 %v319
      %v587 = vunpack.c.l.b16 %v320
      %v588 = vunpack.c.l.b16 %v321
      %v589 = vunpack.c.l.b16 %v322
      %v590 = vunpack.c.l.b16 %v323
      %v591 = vunpack.c.l.b16 %v324
      %v592 = vunpack.c.l.b16 %v325
      %v593 = vunpack.c.l.b16 %v326
      %v594 = vunpack.c.l.b16 %v327
      %v595 = vunpack.c.l.b16 %v328
      %v596 = vunpack.c.l.b16 %v329
      %v597 = vunpack.c.l.b16 %v330
      %v598 = vunpack.c.l.b16 %v331
      %v599 = vunpack.c.l.b16 %v332
      %v600 = vunpack.c.l.b16 %v333
      %v601 = vunpack.c.l.b16 %v334
      %v602 = vunpack.c.l.b16 %v335
      %v603 = vunpack.c.l.b16 %v336
      %v604 = vunpack.c.l.b16 %v337
      %v605 = vunpack.c.l.b16 %v338
      %v606 = vunpack.c.l.b16 %v339
      %v607 = vunpack.c.l.b16 %v340
      %v608 = vunpack.c.l.b16 %v341
      %v609 = vunpack.c.l.b16 %v342
      %v610 = vunpack.c.l.b16 %v343
      %v611 = vunpack.c.l.b16 %v344
      %v612 = vunpack.c.l.b16 %v345
      %v613 = vunpack.c.l.b16 %v346
      %v614 = vunpack.c.l.b16 %v347
      %v615 = vunpack.c.l.b16 %v348
      %v616 = vunpack.c.l.b16 %v349
      %v617 = vunpack.c.l.b16 %v350
      %v618 = vunpack.c.l.b16 %v351
      %v619 = vunpack.c.l.b16 %v352
      %v620 = vunpack.c.l.b16 %v353
      %v621 = vpack.c.b16 %v494, %v493
      %v622 = vpack.c.b16 %v496, %v495
      %v623 = vpack.c.b16 %v498, %v497
      %v624 = vpack.c.b16 %v500, %v499
      %v625 = vpack.c.b16 %v502, %v501
      %v626 = vpack.c.b16 %v504, %v503
      %v627 = vpack.c.b16 %v506, %v505
      %v628 = vpack.c.b16 %v508, %v507
      %v629 = vpack.c.b16 %v510, %v509
      %v630 = vpack.c.b16 %v512, %v511
      %v631 = vpack.c.b16 %v514, %v513
      %v632 = vpack.c.b16 %v516, %v515
      %v633 = vpack.c.b16 %v518, %v517
      %v634 = vpack.c.b16 %v520, %v519
      %v635 = vpack.c.b16 %v522, %v521
      %v636 = vpack.c.b16 %v524, %v523
      %v637 = vpack.c.b16 %v526, %v525
      %v638 = vpack.c.b16 %v528, %v527
      %v639 = vpack.c.b16 %v530, %v529
      %v640 = vpack.c.b16 %v532, %v531
      %v641 = vpack.c.b16 %v534, %v533
      %v642 = vpack.c.b16 %v536, %v535
      %v643 = vpack.c.b16 %v538, %v537
      %v644 = vpack.c.b16 %v540, %v539
      %v645 = vpack.c.b16 %v542, %v541
      %v646 = vpack.c.b16 %v544, %v543
      %v647 = vpack.c.b16 %v546, %v545
      %v648 = vpack.c.b16 %v548, %v547
      %v649 = vpack.c.b16 %v550, %v549
      %v650 = vpack.c.b16 %v552, %v551
      %v651 = vpack.c.b16 %v554, %v553
      %v652 = vpack.c.b16 %v556, %v555
      %v653 = vpack.c.b16 %v558, %v557
      %v654 = vpack.c.b16 %v560, %v559
      %v655 = vpack.c.b16 %v562, %v561
      %v656 = vpack.c.b16 %v564, %v563
      %v657 = vpack.c.b16 %v566, %v565
      %v658 = vpack.c.b16 %v568, %v567
      %v659 = vpack.c.b16 %v570, %v569
      %v660 = vpack.c.b16 %v572, %v571
      %v661 = vpack.c.b16 %v574, %v573
      %v662 = vpack.c.b16 %v576, %v575
      %v663 = vpack.c.b16 %v578, %v577
      %v664 = vpack.c.b16 %v580, %v579
      %v665 = vpack.c.b16 %v582, %v581
      %v666 = vpack.c.b16 %v584, %v583
      %v667 = vpack.c.b16 %v586, %v585
      %v668 = vpack.c.b16 %v588, %v587
      %v669 = vpack.c.b16 %v590, %v589
      %v670 = vpack.c.b16 %v592, %v591
      %v671 = vpack.c.b16 %v594, %v593
      %v672 = vpack.c.b16 %v596, %v595
      %v673 = vpack.c.b16 %v598, %v597
      %v674 = vpack.c.b16 %v600, %v599
      %v675 = vpack.c.b16 %v602, %v601
      %v676 = vpack.c.b16 %v604, %v603
      %v677 = vpack.c.b16 %v606, %v605
      %v678 = vpack.c.b16 %v608, %v607
      %v679 = vpack.c.b16 %v610, %v609
      %v680 = vpack.c.b16 %v612, %v611
      %v681 = vpack.c.b16 %v614, %v613
      %v682 = vpack.c.b16 %v616, %v615
      %v683 = vpack.c.b16 %v618, %v617
      %v684 = vpack.c.b16 %v620, %v619
      %v689 = vunpack.c.l.b16 %v354
      %v690 = vunpack.c.l.b16 %v355
      %v691 = vunpack.c.l.b16 %v356
      %v692 = vunpack.c.l.b16 %v357
      %v693 = vpack.c.b16 %v690, %v689
      %v694 = vpack.c.b16 %v692, %v691
      %vm696 = vcmask 220160
      %v698 = vsel %vm696, %v621, 0
      %v701 = vsel %vm696, %v622, 0
      %v704 = vsel %vm696, %v623, 0
      %v707 = vsel %vm696, %v624, 0
      %v710 = vsel %vm696, %v625, 0
      %v713 = vsel %vm696, %v626, 0
      %v716 = vsel %vm696, %v627, 0
      %v719 = vsel %vm696, %v628, 0
      %v722 = vsel %vm696, %v629, 0
      %v725 = vsel %vm696, %v630, 0
      %v728 = vsel %vm696, %v631, 0
      %v731 = vsel %vm696, %v632, 0
      %v734 = vsel %vm696, %v633, 0
      %v737 = vsel %vm696, %v634, 0
      %v740 = vsel %vm696, %v635, 0
      %v743 = vsel %vm696, %v636, 0
      %v746 = vsel %vm696, %v637, 0
      %v749 = vsel %vm696, %v638, 0
      %v752 = vsel %vm696, %v639, 0
      %v755 = vsel %vm696, %v640, 0
      %v758 = vsel %vm696, %v641, 0
      %v761 = vsel %vm696, %v642, 0
      %v764 = vsel %vm696, %v643, 0
      %v767 = vsel %vm696, %v644, 0
      %v770 = vsel %vm696, %v645, 0
      %v773 = vsel %vm696, %v646, 0
      %v776 = vsel %vm696, %v647, 0
      %v779 = vsel %vm696, %v648, 0
      %v782 = vsel %vm696, %v649, 0
      %v785 = vsel %vm696, %v650, 0
      %v788 = vsel %vm696, %v651, 0
      %v791 = vsel %vm696, %v652, 0
      %v794 = vsel %vm696, %v653, 0
      %v797 = vsel %vm696, %v654, 0
      %v800 = vsel %vm696, %v655, 0
      %v803 = vsel %vm696, %v656, 0
      %v806 = vsel %vm696, %v657, 0
      %v809 = vsel %vm696, %v658, 0
      %v812 = vsel %vm696, %v659, 0
      %v815 = vsel %vm696, %v660, 0
      %v818 = vsel %vm696, %v661, 0
      %v821 = vsel %vm696, %v662, 0
      %v824 = vsel %vm696, %v663, 0
      %v827 = vsel %vm696, %v664, 0
      %v830 = vsel %vm696, %v665, 0
      %v833 = vsel %vm696, %v666, 0
      %v836 = vsel %vm696, %v667, 0
      %v839 = vsel %vm696, %v668, 0
      %v842 = vsel %vm696, %v669, 0
      %v845 = vsel %vm696, %v670, 0
      %v848 = vsel %vm696, %v671, 0
      %v851 = vsel %vm696, %v672, 0
      %v854 = vsel %vm696, %v673, 0
      %v857 = vsel %vm696, %v674, 0
      %v860 = vsel %vm696, %v675, 0
      %v863 = vsel %vm696, %v676, 0
      %v866 = vsel %vm696, %v677, 0
      %v869 = vsel %vm696, %v678, 0
      %v872 = vsel %vm696, %v679, 0
      %v875 = vsel %vm696, %v680, 0
      %v878 = vsel %vm696, %v681, 0
      %v881 = vsel %vm696, %v682, 0
      %v884 = vsel %vm696, %v683, 0
      %v887 = vsel %vm696, %v684, 0
      %vm889 = vcmask 1044480
      %vm890 = vcmask 1045504
      %v891 = vsel %vm889, 4294967295, 65535
      %v892 = vsel %vm890, %v891, 0
      %v894 = vand.u32 %v694, %v892
      %896 = vmatprep.subr.bf16.mxu0 0
      %897 = vmatpush1.bf16.msra.mxu0 %v693
      %898 = vmatprep.subr.bf16.mxu0 0
      %899 = vmatpush1.bf16.msra.mxu0 %v894
      %900 = vmatprep.subr.bf16.mxu0 0
      %901 = vmatpush1.bf16.msra.mxu0 0
      %902 = vmatprep.subr.bf16.mxu0 0
      %903 = vmatpush1.bf16.msra.mxu0 0
      %904 = vmatprep.subr.bf16.mxu0 0
      %905 = vmatpush1.bf16.msra.mxu0 0
      %906 = vmatprep.subr.bf16.mxu0 0
      %907 = vmatpush1.bf16.msra.mxu0 0
      %908 = vmatprep.subr.bf16.mxu0 0
      %909 = vmatpush1.bf16.msra.mxu0 0
      %910 = vmatprep.subr.bf16.mxu0 0
      %911 = vmatpush1.bf16.msra.mxu0 0
      %912 = vmatprep.subr.bf16.mxu0 0
      %913 = vmatpush1.bf16.msra.mxu0 0
      %914 = vmatprep.subr.bf16.mxu0 0
      %915 = vmatpush1.bf16.msra.mxu0 0
      %916 = vmatprep.subr.bf16.mxu0 0
      %917 = vmatpush1.bf16.msra.mxu0 0
      %918 = vmatprep.subr.bf16.mxu0 0
      %919 = vmatpush1.bf16.msra.mxu0 0
      %920 = vmatprep.subr.bf16.mxu0 0
      %921 = vmatpush1.bf16.msra.mxu0 0
      %922 = vmatprep.subr.bf16.mxu0 0
      %923 = vmatpush1.bf16.msra.mxu0 0
      %924 = vmatprep.subr.bf16.mxu0 0
      %925 = vmatpush1.bf16.msra.mxu0 0
      %926 = vmatprep.subr.bf16.mxu0 0
      %927 = vmatpush1.bf16.msra.mxu0 0
      %928 = vmatprep.mubr.bf16.mxu0 0
      %929 = vmatmul.mubr.bf16.gmra.mrb[0].mxu0 %v698
      %v930 = vpop.f32.mrb[0].mxu0
      %v931 = vadd.f32 %v363, %v930
      %v932 = vpop.f32.mrb[0].mxu0
      %v933 = vpop.f32.mrb[0].mxu0
      %v934 = vadd.f32 %v363, %v933
      %v935 = vpop.f32.mrb[0].mxu0
      %936 = vmatprep.mubr.bf16.mxu0 0
      %937 = vmatmul.mubr.bf16.gmra.mrb[0].mxu0 %v701
      %v938 = vpop.f32.mrb[0].mxu0
      %v939 = vadd.f32 %v363, %v938
      %v940 = vpop.f32.mrb[0].mxu0
      %v941 = vpop.f32.mrb[0].mxu0
      %v942 = vadd.f32 %v363, %v941
      %v943 = vpop.f32.mrb[0].mxu0
      %944 = vmatprep.mubr.bf16.mxu0 0
      %945 = vmatmul.mubr.bf16.gmra.mrb[0].mxu0 %v704
      %v946 = vpop.f32.mrb[0].mxu0
      %v947 = vadd.f32 %v363, %v946
      %v948 = vpop.f32.mrb[0].mxu0
      %v949 = vpop.f32.mrb[0].mxu0
      %v950 = vadd.f32 %v363, %v949
      %v951 = vpop.f32.mrb[0].mxu0
      %952 = vmatprep.mubr.bf16.mxu0 0
      %953 = vmatmul.mubr.bf16.gmra.mrb[0].mxu0 %v707
      %v954 = vpop.f32.mrb[0].mxu0
      %v955 = vadd.f32 %v363, %v954
      %v956 = vpop.f32.mrb[0].mxu0
      %v957 = vpop.f32.mrb[0].mxu0
      %v958 = vadd.f32 %v363, %v957
      %v959 = vpop.f32.mrb[0].mxu0
      %960 = vmatprep.mubr.bf16.mxu0 0
      %961 = vmatmul.mubr.bf16.gmra.mrb[0].mxu0 %v710
      %v962 = vpop.f32.mrb[0].mxu0
      %v963 = vadd.f32 %v363, %v962
      %v964 = vpop.f32.mrb[0].mxu0
      %v965 = vpop.f32.mrb[0].mxu0
      %v966 = vadd.f32 %v363, %v965
      %v967 = vpop.f32.mrb[0].mxu0
      %968 = vmatprep.mubr.bf16.mxu0 0
      %969 = vmatmul.mubr.bf16.gmra.mrb[0].mxu0 %v713
      %v970 = vpop.f32.mrb[0].mxu0
      %v971 = vadd.f32 %v363, %v970
      %v972 = vpop.f32.mrb[0].mxu0
      %v973 = vpop.f32.mrb[0].mxu0
      %v974 = vadd.f32 %v363, %v973
      %v975 = vpop.f32.mrb[0].mxu0
      %976 = vmatprep.mubr.bf16.mxu0 0
      %977 = vmatmul.mubr.bf16.gmra.mrb[0].mxu0 %v716
      %v978 = vpop.f32.mrb[0].mxu0
      %v979 = vadd.f32 %v363, %v978
      %v980 = vpop.f32.mrb[0].mxu0
      %v981 = vpop.f32.mrb[0].mxu0
      %v982 = vadd.f32 %v363, %v981
      %v983 = vpop.f32.mrb[0].mxu0
      %984 = vmatprep.mubr.bf16.mxu0 0
      %985 = vmatmul.mubr.bf16.gmra.mrb[0].mxu0 %v719
      %v986 = vpop.f32.mrb[0].mxu0
      %v987 = vadd.f32 %v363, %v986
      %v988 = vpop.f32.mrb[0].mxu0
      %v989 = vpop.f32.mrb[0].mxu0
      %v990 = vadd.f32 %v363, %v989
      %v991 = vpop.f32.mrb[0].mxu0
      %992 = vmatprep.mubr.bf16.mxu0 0
      %993 = vmatmul.mubr.bf16.gmra.mrb[0].mxu0 %v722
      %v994 = vpop.f32.mrb[0].mxu0
      %v995 = vadd.f32 %v363, %v994
      %v996 = vpop.f32.mrb[0].mxu0
      %v997 = vpop.f32.mrb[0].mxu0
      %v998 = vadd.f32 %v363, %v997
      %v999 = vpop.f32.mrb[0].mxu0
      %1000 = vmatprep.mubr.bf16.mxu0 0
      %1001 = vmatmul.mubr.bf16.gmra.mrb[0].mxu0 %v725
      %v1002 = vpop.f32.mrb[0].mxu0
      %v1003 = vadd.f32 %v363, %v1002
      %v1004 = vpop.f32.mrb[0].mxu0
      %v1005 = vpop.f32.mrb[0].mxu0
      %v1006 = vadd.f32 %v363, %v1005
      %v1007 = vpop.f32.mrb[0].mxu0
      %1008 = vmatprep.mubr.bf16.mxu0 0
      %1009 = vmatmul.mubr.bf16.gmra.mrb[0].mxu0 %v728
      %v1010 = vpop.f32.mrb[0].mxu0
      %v1011 = vadd.f32 %v363, %v1010
      %v1012 = vpop.f32.mrb[0].mxu0
      %v1013 = vpop.f32.mrb[0].mxu0
      %v1014 = vadd.f32 %v363, %v1013
      %v1015 = vpop.f32.mrb[0].mxu0
      %1016 = vmatprep.mubr.bf16.mxu0 0
      %1017 = vmatmul.mubr.bf16.gmra.mrb[0].mxu0 %v731
      %v1018 = vpop.f32.mrb[0].mxu0
      %v1019 = vadd.f32 %v363, %v1018
      %v1020 = vpop.f32.mrb[0].mxu0
      %v1021 = vpop.f32.mrb[0].mxu0
      %v1022 = vadd.f32 %v363, %v1021
      %v1023 = vpop.f32.mrb[0].mxu0
      %1024 = vmatprep.mubr.bf16.mxu0 0
      %1025 = vmatmul.mubr.bf16.gmra.mrb[0].mxu0 %v734
      %v1026 = vpop.f32.mrb[0].mxu0
      %v1027 = vadd.f32 %v363, %v1026
      %v1028 = vpop.f32.mrb[0].mxu0
      %v1029 = vpop.f32.mrb[0].mxu0
      %v1030 = vadd.f32 %v363, %v1029
      %v1031 = vpop.f32.mrb[0].mxu0
      %1032 = vmatprep.mubr.bf16.mxu0 0
      %1033 = vmatmul.mubr.bf16.gmra.mrb[0].mxu0 %v737
      %v1034 = vpop.f32.mrb[0].mxu0
      %v1035 = vadd.f32 %v363, %v1034
      %v1036 = vpop.f32.mrb[0].mxu0
      %v1037 = vpop.f32.mrb[0].mxu0
      %v1038 = vadd.f32 %v363, %v1037
      %v1039 = vpop.f32.mrb[0].mxu0
      %1040 = vmatprep.mubr.bf16.mxu0 0
      %1041 = vmatmul.mubr.bf16.gmra.mrb[0].mxu0 %v740
      %v1042 = vpop.f32.mrb[0].mxu0
      %v1043 = vadd.f32 %v363, %v1042
      %v1044 = vpop.f32.mrb[0].mxu0
      %v1045 = vpop.f32.mrb[0].mxu0
      %v1046 = vadd.f32 %v363, %v1045
      %v1047 = vpop.f32.mrb[0].mxu0
      %1048 = vmatprep.mubr.bf16.mxu0 0
      %1049 = vmatmul.mubr.bf16.gmra.mrb[0].mxu0 %v743
      %v1050 = vpop.f32.mrb[0].mxu0
      %v1051 = vadd.f32 %v363, %v1050
      %v1052 = vpop.f32.mrb[0].mxu0
      %v1053 = vpop.f32.mrb[0].mxu0
      %v1054 = vadd.f32 %v363, %v1053
      %v1055 = vpop.f32.mrb[0].mxu0
      %1056 = vmatprep.mubr.bf16.mxu0 0
      %1057 = vmatmul.mubr.bf16.gmra.mrb[0].mxu0 %v746
      %v1058 = vpop.f32.mrb[0].mxu0
      %v1059 = vadd.f32 %v363, %v1058
      %v1060 = vpop.f32.mrb[0].mxu0
      %v1061 = vpop.f32.mrb[0].mxu0
      %v1062 = vadd.f32 %v363, %v1061
      %v1063 = vpop.f32.mrb[0].mxu0
      %1064 = vmatprep.mubr.bf16.mxu0 0
      %1065 = vmatmul.mubr.bf16.gmra.mrb[0].mxu0 %v749
      %v1066 = vpop.f32.mrb[0].mxu0
      %v1067 = vadd.f32 %v363, %v1066
      %v1068 = vpop.f32.mrb[0].mxu0
      %v1069 = vpop.f32.mrb[0].mxu0
      %v1070 = vadd.f32 %v363, %v1069
      %v1071 = vpop.f32.mrb[0].mxu0
      %1072 = vmatprep.mubr.bf16.mxu0 0
      %1073 = vmatmul.mubr.bf16.gmra.mrb[0].mxu0 %v752
      %v1074 = vpop.f32.mrb[0].mxu0
      %v1075 = vadd.f32 %v363, %v1074
      %v1076 = vpop.f32.mrb[0].mxu0
      %v1077 = vpop.f32.mrb[0].mxu0
      %v1078 = vadd.f32 %v363, %v1077
      %v1079 = vpop.f32.mrb[0].mxu0
      %1080 = vmatprep.mubr.bf16.mxu0 0
      %1081 = vmatmul.mubr.bf16.gmra.mrb[0].mxu0 %v755
      %v1082 = vpop.f32.mrb[0].mxu0
      %v1083 = vadd.f32 %v363, %v1082
      %v1084 = vpop.f32.mrb[0].mxu0
      %v1085 = vpop.f32.mrb[0].mxu0
      %v1086 = vadd.f32 %v363, %v1085
      %v1087 = vpop.f32.mrb[0].mxu0
      %1088 = vmatprep.mubr.bf16.mxu0 0
      %1089 = vmatmul.mubr.bf16.gmra.mrb[0].mxu0 %v758
      %v1090 = vpop.f32.mrb[0].mxu0
      %v1091 = vadd.f32 %v363, %v1090
      %v1092 = vpop.f32.mrb[0].mxu0
      %v1093 = vpop.f32.mrb[0].mxu0
      %v1094 = vadd.f32 %v363, %v1093
      %v1095 = vpop.f32.mrb[0].mxu0
      %1096 = vmatprep.mubr.bf16.mxu0 0
      %1097 = vmatmul.mubr.bf16.gmra.mrb[0].mxu0 %v761
      %v1098 = vpop.f32.mrb[0].mxu0
      %v1099 = vadd.f32 %v363, %v1098
      %v1100 = vpop.f32.mrb[0].mxu0
      %v1101 = vpop.f32.mrb[0].mxu0
      %v1102 = vadd.f32 %v363, %v1101
      %v1103 = vpop.f32.mrb[0].mxu0
      %1104 = vmatprep.mubr.bf16.mxu0 0
      %1105 = vmatmul.mubr.bf16.gmra.mrb[0].mxu0 %v764
      %v1106 = vpop.f32.mrb[0].mxu0
      %v1107 = vadd.f32 %v363, %v1106
      %v1108 = vpop.f32.mrb[0].mxu0
      %v1109 = vpop.f32.mrb[0].mxu0
      %v1110 = vadd.f32 %v363, %v1109
      %v1111 = vpop.f32.mrb[0].mxu0
      %1112 = vmatprep.mubr.bf16.mxu0 0
      %1113 = vmatmul.mubr.bf16.gmra.mrb[0].mxu0 %v767
      %v1114 = vpop.f32.mrb[0].mxu0
      %v1115 = vadd.f32 %v363, %v1114
      %v1116 = vpop.f32.mrb[0].mxu0
      %v1117 = vpop.f32.mrb[0].mxu0
      %v1118 = vadd.f32 %v363, %v1117
      %v1119 = vpop.f32.mrb[0].mxu0
      %1120 = vmatprep.mubr.bf16.mxu0 0
      %1121 = vmatmul.mubr.bf16.gmra.mrb[0].mxu0 %v770
      %v1122 = vpop.f32.mrb[0].mxu0
      %v1123 = vadd.f32 %v363, %v1122
      %v1124 = vpop.f32.mrb[0].mxu0
      %v1125 = vpop.f32.mrb[0].mxu0
      %v1126 = vadd.f32 %v363, %v1125
      %v1127 = vpop.f32.mrb[0].mxu0
      %1128 = vmatprep.mubr.bf16.mxu0 0
      %1129 = vmatmul.mubr.bf16.gmra.mrb[0].mxu0 %v773
      %v1130 = vpop.f32.mrb[0].mxu0
      %v1131 = vadd.f32 %v363, %v1130
      %v1132 = vpop.f32.mrb[0].mxu0
      %v1133 = vpop.f32.mrb[0].mxu0
      %v1134 = vadd.f32 %v363, %v1133
      %v1135 = vpop.f32.mrb[0].mxu0
      %1136 = vmatprep.mubr.bf16.mxu0 0
      %1137 = vmatmul.mubr.bf16.gmra.mrb[0].mxu0 %v776
      %v1138 = vpop.f32.mrb[0].mxu0
      %v1139 = vadd.f32 %v363, %v1138
      %v1140 = vpop.f32.mrb[0].mxu0
      %v1141 = vpop.f32.mrb[0].mxu0
      %v1142 = vadd.f32 %v363, %v1141
      %v1143 = vpop.f32.mrb[0].mxu0
      %1144 = vmatprep.mubr.bf16.mxu0 0
      %1145 = vmatmul.mubr.bf16.gmra.mrb[0].mxu0 %v779
      %v1146 = vpop.f32.mrb[0].mxu0
      %v1147 = vadd.f32 %v363, %v1146
      %v1148 = vpop.f32.mrb[0].mxu0
      %v1149 = vpop.f32.mrb[0].mxu0
      %v1150 = vadd.f32 %v363, %v1149
      %v1151 = vpop.f32.mrb[0].mxu0
      %1152 = vmatprep.mubr.bf16.mxu0 0
      %1153 = vmatmul.mubr.bf16.gmra.mrb[0].mxu0 %v782
      %v1154 = vpop.f32.mrb[0].mxu0
      %v1155 = vadd.f32 %v363, %v1154
      %v1156 = vpop.f32.mrb[0].mxu0
      %v1157 = vpop.f32.mrb[0].mxu0
      %v1158 = vadd.f32 %v363, %v1157
      %v1159 = vpop.f32.mrb[0].mxu0
      %1160 = vmatprep.mubr.bf16.mxu0 0
      %1161 = vmatmul.mubr.bf16.gmra.mrb[0].mxu0 %v785
      %v1162 = vpop.f32.mrb[0].mxu0
      %v1163 = vadd.f32 %v363, %v1162
      %v1164 = vpop.f32.mrb[0].mxu0
      %v1165 = vpop.f32.mrb[0].mxu0
      %v1166 = vadd.f32 %v363, %v1165
      %v1167 = vpop.f32.mrb[0].mxu0
      %1168 = vmatprep.mubr.bf16.mxu0 0
      %1169 = vmatmul.mubr.bf16.gmra.mrb[0].mxu0 %v788
      %v1170 = vpop.f32.mrb[0].mxu0
      %v1171 = vadd.f32 %v363, %v1170
      %v1172 = vpop.f32.mrb[0].mxu0
      %v1173 = vpop.f32.mrb[0].mxu0
      %v1174 = vadd.f32 %v363, %v1173
      %v1175 = vpop.f32.mrb[0].mxu0
      %1176 = vmatprep.mubr.bf16.mxu0 0
      %1177 = vmatmul.mubr.bf16.gmra.mrb[0].mxu0 %v791
      %v1178 = vpop.f32.mrb[0].mxu0
      %v1179 = vadd.f32 %v363, %v1178
      %v1180 = vpop.f32.mrb[0].mxu0
      %v1181 = vpop.f32.mrb[0].mxu0
      %v1182 = vadd.f32 %v363, %v1181
      %v1183 = vpop.f32.mrb[0].mxu0
      %1184 = vmatprep.mubr.bf16.mxu0 0
      %1185 = vmatmul.mubr.bf16.gmra.mrb[0].mxu0 %v794
      %v1186 = vpop.f32.mrb[0].mxu0
      %v1187 = vadd.f32 %v363, %v1186
      %v1188 = vpop.f32.mrb[0].mxu0
      %v1189 = vpop.f32.mrb[0].mxu0
      %v1190 = vadd.f32 %v363, %v1189
      %v1191 = vpop.f32.mrb[0].mxu0
      %1192 = vmatprep.mubr.bf16.mxu0 0
      %1193 = vmatmul.mubr.bf16.gmra.mrb[0].mxu0 %v797
      %v1194 = vpop.f32.mrb[0].mxu0
      %v1195 = vadd.f32 %v363, %v1194
      %v1196 = vpop.f32.mrb[0].mxu0
      %v1197 = vpop.f32.mrb[0].mxu0
      %v1198 = vadd.f32 %v363, %v1197
      %v1199 = vpop.f32.mrb[0].mxu0
      %1200 = vmatprep.mubr.bf16.mxu0 0
      %1201 = vmatmul.mubr.bf16.gmra.mrb[0].mxu0 %v800
      %v1202 = vpop.f32.mrb[0].mxu0
      %v1203 = vadd.f32 %v363, %v1202
      %v1204 = vpop.f32.mrb[0].mxu0
      %v1205 = vpop.f32.mrb[0].mxu0
      %v1206 = vadd.f32 %v363, %v1205
      %v1207 = vpop.f32.mrb[0].mxu0
      %1208 = vmatprep.mubr.bf16.mxu0 0
      %1209 = vmatmul.mubr.bf16.gmra.mrb[0].mxu0 %v803
      %v1210 = vpop.f32.mrb[0].mxu0
      %v1211 = vadd.f32 %v363, %v1210
      %v1212 = vpop.f32.mrb[0].mxu0
      %v1213 = vpop.f32.mrb[0].mxu0
      %v1214 = vadd.f32 %v363, %v1213
      %v1215 = vpop.f32.mrb[0].mxu0
      %1216 = vmatprep.mubr.bf16.mxu0 0
      %1217 = vmatmul.mubr.bf16.gmra.mrb[0].mxu0 %v806
      %v1218 = vpop.f32.mrb[0].mxu0
      %v1219 = vadd.f32 %v363, %v1218
      %v1220 = vpop.f32.mrb[0].mxu0
      %v1221 = vpop.f32.mrb[0].mxu0
      %v1222 = vadd.f32 %v363, %v1221
      %v1223 = vpop.f32.mrb[0].mxu0
      %1224 = vmatprep.mubr.bf16.mxu0 0
      %1225 = vmatmul.mubr.bf16.gmra.mrb[0].mxu0 %v809
      %v1226 = vpop.f32.mrb[0].mxu0
      %v1227 = vadd.f32 %v363, %v1226
      %v1228 = vpop.f32.mrb[0].mxu0
      %v1229 = vpop.f32.mrb[0].mxu0
      %v1230 = vadd.f32 %v363, %v1229
      %v1231 = vpop.f32.mrb[0].mxu0
      %1232 = vmatprep.mubr.bf16.mxu0 0
      %1233 = vmatmul.mubr.bf16.gmra.mrb[0].mxu0 %v812
      %v1234 = vpop.f32.mrb[0].mxu0
      %v1235 = vadd.f32 %v363, %v1234
      %v1236 = vpop.f32.mrb[0].mxu0
      %v1237 = vpop.f32.mrb[0].mxu0
      %v1238 = vadd.f32 %v363, %v1237
      %v1239 = vpop.f32.mrb[0].mxu0
      %1240 = vmatprep.mubr.bf16.mxu0 0
      %1241 = vmatmul.mubr.bf16.gmra.mrb[0].mxu0 %v815
      %v1242 = vpop.f32.mrb[0].mxu0
      %v1243 = vadd.f32 %v363, %v1242
      %v1244 = vpop.f32.mrb[0].mxu0
      %v1245 = vpop.f32.mrb[0].mxu0
      %v1246 = vadd.f32 %v363, %v1245
      %v1247 = vpop.f32.mrb[0].mxu0
      %1248 = vmatprep.mubr.bf16.mxu0 0
      %1249 = vmatmul.mubr.bf16.gmra.mrb[0].mxu0 %v818
      %v1250 = vpop.f32.mrb[0].mxu0
      %v1251 = vadd.f32 %v363, %v1250
      %v1252 = vpop.f32.mrb[0].mxu0
      %v1253 = vpop.f32.mrb[0].mxu0
      %v1254 = vadd.f32 %v363, %v1253
      %v1255 = vpop.f32.mrb[0].mxu0
      %1256 = vmatprep.mubr.bf16.mxu0 0
      %1257 = vmatmul.mubr.bf16.gmra.mrb[0].mxu0 %v821
      %v1258 = vpop.f32.mrb[0].mxu0
      %v1259 = vadd.f32 %v363, %v1258
      %v1260 = vpop.f32.mrb[0].mxu0
      %v1261 = vpop.f32.mrb[0].mxu0
      %v1262 = vadd.f32 %v363, %v1261
      %v1263 = vpop.f32.mrb[0].mxu0
      %1264 = vmatprep.mubr.bf16.mxu0 0
      %1265 = vmatmul.mubr.bf16.gmra.mrb[0].mxu0 %v824
      %v1266 = vpop.f32.mrb[0].mxu0
      %v1267 = vadd.f32 %v363, %v1266
      %v1268 = vpop.f32.mrb[0].mxu0
      %v1269 = vpop.f32.mrb[0].mxu0
      %v1270 = vadd.f32 %v363, %v1269
      %v1271 = vpop.f32.mrb[0].mxu0
      %1272 = vmatprep.mubr.bf16.mxu0 0
      %1273 = vmatmul.mubr.bf16.gmra.mrb[0].mxu0 %v827
      %v1274 = vpop.f32.mrb[0].mxu0
      %v1275 = vadd.f32 %v363, %v1274
      %v1276 = vpop.f32.mrb[0].mxu0
      %v1277 = vpop.f32.mrb[0].mxu0
      %v1278 = vadd.f32 %v363, %v1277
      %v1279 = vpop.f32.mrb[0].mxu0
      %1280 = vmatprep.mubr.bf16.mxu0 0
      %1281 = vmatmul.mubr.bf16.gmra.mrb[0].mxu0 %v830
      %v1282 = vpop.f32.mrb[0].mxu0
      %v1283 = vadd.f32 %v363, %v1282
      %v1284 = vpop.f32.mrb[0].mxu0
      %v1285 = vpop.f32.mrb[0].mxu0
      %v1286 = vadd.f32 %v363, %v1285
      %v1287 = vpop.f32.mrb[0].mxu0
      %1288 = vmatprep.mubr.bf16.mxu0 0
      %1289 = vmatmul.mubr.bf16.gmra.mrb[0].mxu0 %v833
      %v1290 = vpop.f32.mrb[0].mxu0
      %v1291 = vadd.f32 %v363, %v1290
      %v1292 = vpop.f32.mrb[0].mxu0
      %v1293 = vpop.f32.mrb[0].mxu0
      %v1294 = vadd.f32 %v363, %v1293
      %v1295 = vpop.f32.mrb[0].mxu0
      %1296 = vmatprep.mubr.bf16.mxu0 0
      %1297 = vmatmul.mubr.bf16.gmra.mrb[0].mxu0 %v836
      %v1298 = vpop.f32.mrb[0].mxu0
      %v1299 = vadd.f32 %v363, %v1298
      %v1300 = vpop.f32.mrb[0].mxu0
      %v1301 = vpop.f32.mrb[0].mxu0
      %v1302 = vadd.f32 %v363, %v1301
      %v1303 = vpop.f32.mrb[0].mxu0
      %1304 = vmatprep.mubr.bf16.mxu0 0
      %1305 = vmatmul.mubr.bf16.gmra.mrb[0].mxu0 %v839
      %v1306 = vpop.f32.mrb[0].mxu0
      %v1307 = vadd.f32 %v363, %v1306
      %v1308 = vpop.f32.mrb[0].mxu0
      %v1309 = vpop.f32.mrb[0].mxu0
      %v1310 = vadd.f32 %v363, %v1309
      %v1311 = vpop.f32.mrb[0].mxu0
      %1312 = vmatprep.mubr.bf16.mxu0 0
      %1313 = vmatmul.mubr.bf16.gmra.mrb[0].mxu0 %v842
      %v1314 = vpop.f32.mrb[0].mxu0
      %v1315 = vadd.f32 %v363, %v1314
      %v1316 = vpop.f32.mrb[0].mxu0
      %v1317 = vpop.f32.mrb[0].mxu0
      %v1318 = vadd.f32 %v363, %v1317
      %v1319 = vpop.f32.mrb[0].mxu0
      %1320 = vmatprep.mubr.bf16.mxu0 0
      %1321 = vmatmul.mubr.bf16.gmra.mrb[0].mxu0 %v845
      %v1322 = vpop.f32.mrb[0].mxu0
      %v1323 = vadd.f32 %v363, %v1322
      %v1324 = vpop.f32.mrb[0].mxu0
      %v1325 = vpop.f32.mrb[0].mxu0
      %v1326 = vadd.f32 %v363, %v1325
      %v1327 = vpop.f32.mrb[0].mxu0
      %1328 = vmatprep.mubr.bf16.mxu0 0
      %1329 = vmatmul.mubr.bf16.gmra.mrb[0].mxu0 %v848
      %v1330 = vpop.f32.mrb[0].mxu0
      %v1331 = vadd.f32 %v363, %v1330
      %v1332 = vpop.f32.mrb[0].mxu0
      %v1333 = vpop.f32.mrb[0].mxu0
      %v1334 = vadd.f32 %v363, %v1333
      %v1335 = vpop.f32.mrb[0].mxu0
      %1336 = vmatprep.mubr.bf16.mxu0 0
      %1337 = vmatmul.mubr.bf16.gmra.mrb[0].mxu0 %v851
      %v1338 = vpop.f32.mrb[0].mxu0
      %v1339 = vadd.f32 %v363, %v1338
      %v1340 = vpop.f32.mrb[0].mxu0
      %v1341 = vpop.f32.mrb[0].mxu0
      %v1342 = vadd.f32 %v363, %v1341
      %v1343 = vpop.f32.mrb[0].mxu0
      %1344 = vmatprep.mubr.bf16.mxu0 0
      %1345 = vmatmul.mubr.bf16.gmra.mrb[0].mxu0 %v854
      %v1346 = vpop.f32.mrb[0].mxu0
      %v1347 = vadd.f32 %v363, %v1346
      %v1348 = vpop.f32.mrb[0].mxu0
      %v1349 = vpop.f32.mrb[0].mxu0
      %v1350 = vadd.f32 %v363, %v1349
      %v1351 = vpop.f32.mrb[0].mxu0
      %1352 = vmatprep.mubr.bf16.mxu0 0
      %1353 = vmatmul.mubr.bf16.gmra.mrb[0].mxu0 %v857
      %v1354 = vpop.f32.mrb[0].mxu0
      %v1355 = vadd.f32 %v363, %v1354
      %v1356 = vpop.f32.mrb[0].mxu0
      %v1357 = vpop.f32.mrb[0].mxu0
      %v1358 = vadd.f32 %v363, %v1357
      %v1359 = vpop.f32.mrb[0].mxu0
      %1360 = vmatprep.mubr.bf16.mxu0 0
      %1361 = vmatmul.mubr.bf16.gmra.mrb[0].mxu0 %v860
      %v1362 = vpop.f32.mrb[0].mxu0
      %v1363 = vadd.f32 %v363, %v1362
      %v1364 = vpop.f32.mrb[0].mxu0
      %v1365 = vpop.f32.mrb[0].mxu0
      %v1366 = vadd.f32 %v363, %v1365
      %v1367 = vpop.f32.mrb[0].mxu0
      %1368 = vmatprep.mubr.bf16.mxu0 0
      %1369 = vmatmul.mubr.bf16.gmra.mrb[0].mxu0 %v863
      %v1370 = vpop.f32.mrb[0].mxu0
      %v1371 = vadd.f32 %v363, %v1370
      %v1372 = vpop.f32.mrb[0].mxu0
      %v1373 = vpop.f32.mrb[0].mxu0
      %v1374 = vadd.f32 %v363, %v1373
      %v1375 = vpop.f32.mrb[0].mxu0
      %1376 = vmatprep.mubr.bf16.mxu0 0
      %1377 = vmatmul.mubr.bf16.gmra.mrb[0].mxu0 %v866
      %v1378 = vpop.f32.mrb[0].mxu0
      %v1379 = vadd.f32 %v363, %v1378
      %v1380 = vpop.f32.mrb[0].mxu0
      %v1381 = vpop.f32.mrb[0].mxu0
      %v1382 = vadd.f32 %v363, %v1381
      %v1383 = vpop.f32.mrb[0].mxu0
      %1384 = vmatprep.mubr.bf16.mxu0 0
      %1385 = vmatmul.mubr.bf16.gmra.mrb[0].mxu0 %v869
      %v1386 = vpop.f32.mrb[0].mxu0
      %v1387 = vadd.f32 %v363, %v1386
      %v1388 = vpop.f32.mrb[0].mxu0
      %v1389 = vpop.f32.mrb[0].mxu0
      %v1390 = vadd.f32 %v363, %v1389
      %v1391 = vpop.f32.mrb[0].mxu0
      %1392 = vmatprep.mubr.bf16.mxu0 0
      %1393 = vmatmul.mubr.bf16.gmra.mrb[0].mxu0 %v872
      %v1394 = vpop.f32.mrb[0].mxu0
      %v1395 = vadd.f32 %v363, %v1394
      %v1396 = vpop.f32.mrb[0].mxu0
      %v1397 = vpop.f32.mrb[0].mxu0
      %v1398 = vadd.f32 %v363, %v1397
      %v1399 = vpop.f32.mrb[0].mxu0
      %1400 = vmatprep.mubr.bf16.mxu0 0
      %1401 = vmatmul.mubr.bf16.gmra.mrb[0].mxu0 %v875
      %v1402 = vpop.f32.mrb[0].mxu0
      %v1403 = vadd.f32 %v363, %v1402
      %v1404 = vpop.f32.mrb[0].mxu0
      %v1405 = vpop.f32.mrb[0].mxu0
      %v1406 = vadd.f32 %v363, %v1405
      %v1407 = vpop.f32.mrb[0].mxu0
      %1408 = vmatprep.mubr.bf16.mxu0 0
      %1409 = vmatmul.mubr.bf16.gmra.mrb[0].mxu0 %v878
      %v1410 = vpop.f32.mrb[0].mxu0
      %v1411 = vadd.f32 %v363, %v1410
      %v1412 = vpop.f32.mrb[0].mxu0
      %v1413 = vpop.f32.mrb[0].mxu0
      %v1414 = vadd.f32 %v363, %v1413
      %v1415 = vpop.f32.mrb[0].mxu0
      %1416 = vmatprep.mubr.bf16.mxu0 0
      %1417 = vmatmul.mubr.bf16.gmra.mrb[0].mxu0 %v881
      %v1418 = vpop.f32.mrb[0].mxu0
      %v1419 = vadd.f32 %v363, %v1418
      %v1420 = vpop.f32.mrb[0].mxu0
      %v1421 = vpop.f32.mrb[0].mxu0
      %v1422 = vadd.f32 %v363, %v1421
      %v1423 = vpop.f32.mrb[0].mxu0
      %1424 = vmatprep.mubr.bf16.mxu0 0
      %1425 = vmatmul.mubr.bf16.gmra.mrb[0].mxu0 %v884
      %v1426 = vpop.f32.mrb[0].mxu0
      %v1427 = vadd.f32 %v363, %v1426
      %v1428 = vpop.f32.mrb[0].mxu0
      %v1429 = vpop.f32.mrb[0].mxu0
      %v1430 = vadd.f32 %v363, %v1429
      %v1431 = vpop.f32.mrb[0].mxu0
      %1432 = vmatprep.mubr.bf16.mxu0 0
      %1433 = vmatmul.mubr.bf16.gmra.mrb[0].mxu0 %v887
      %v1434 = vpop.f32.mrb[0].mxu0
      %v1435 = vadd.f32 %v363, %v1434
      %v1436 = vpop.f32.mrb[0].mxu0
      %v1437 = vpop.f32.mrb[0].mxu0
      %v1438 = vadd.f32 %v363, %v1437
      %v1439 = vpop.f32.mrb[0].mxu0
      %1440 = vdwg.mxu0
      %v1441 = vsub.f32 0.0, %v931
      %v1442 = vsub.f32 0.0, %v934
      %v1443 = vsub.f32 0.0, %v939
      %v1444 = vsub.f32 0.0, %v942
      %v1445 = vsub.f32 0.0, %v947
      %v1446 = vsub.f32 0.0, %v950
      %v1447 = vsub.f32 0.0, %v955
      %v1448 = vsub.f32 0.0, %v958
      %v1449 = vsub.f32 0.0, %v963
      %v1450 = vsub.f32 0.0, %v966
      %v1451 = vsub.f32 0.0, %v971
      %v1452 = vsub.f32 0.0, %v974
      %v1453 = vsub.f32 0.0, %v979
      %v1454 = vsub.f32 0.0, %v982
      %v1455 = vsub.f32 0.0, %v987
      %v1456 = vsub.f32 0.0, %v990
      %v1457 = vsub.f32 0.0, %v995
      %v1458 = vsub.f32 0.0, %v998
      %v1459 = vsub.f32 0.0, %v1003
      %v1460 = vsub.f32 0.0, %v1006
      %v1461 = vsub.f32 0.0, %v1011
      %v1462 = vsub.f32 0.0, %v1014
      %v1463 = vsub.f32 0.0, %v1019
      %v1464 = vsub.f32 0.0, %v1022
      %v1465 = vsub.f32 0.0, %v1027
      %v1466 = vsub.f32 0.0, %v1030
      %v1467 = vsub.f32 0.0, %v1035
      %v1468 = vsub.f32 0.0, %v1038
      %v1469 = vsub.f32 0.0, %v1043
      %v1470 = vsub.f32 0.0, %v1046
      %v1471 = vsub.f32 0.0, %v1051
      %v1472 = vsub.f32 0.0, %v1054
      %v1473 = vsub.f32 0.0, %v1059
      %v1474 = vsub.f32 0.0, %v1062
      %v1475 = vsub.f32 0.0, %v1067
      %v1476 = vsub.f32 0.0, %v1070
      %v1477 = vsub.f32 0.0, %v1075
      %v1478 = vsub.f32 0.0, %v1078
      %v1479 = vsub.f32 0.0, %v1083
      %v1480 = vsub.f32 0.0, %v1086
      %v1481 = vsub.f32 0.0, %v1091
      %v1482 = vsub.f32 0.0, %v1094
      %v1483 = vsub.f32 0.0, %v1099
      %v1484 = vsub.f32 0.0, %v1102
      %v1485 = vsub.f32 0.0, %v1107
      %v1486 = vsub.f32 0.0, %v1110
      %v1487 = vsub.f32 0.0, %v1115
      %v1488 = vsub.f32 0.0, %v1118
      %v1489 = vsub.f32 0.0, %v1123
      %v1490 = vsub.f32 0.0, %v1126
      %v1491 = vsub.f32 0.0, %v1131
      %v1492 = vsub.f32 0.0, %v1134
      %v1493 = vsub.f32 0.0, %v1139
      %v1494 = vsub.f32 0.0, %v1142
      %v1495 = vsub.f32 0.0, %v1147
      %v1496 = vsub.f32 0.0, %v1150
      %v1497 = vsub.f32 0.0, %v1155
      %v1498 = vsub.f32 0.0, %v1158
      %v1499 = vsub.f32 0.0, %v1163
      %v1500 = vsub.f32 0.0, %v1166
      %v1501 = vsub.f32 0.0, %v1171
      %v1502 = vsub.f32 0.0, %v1174
      %v1503 = vsub.f32 0.0, %v1179
      %v1504 = vsub.f32 0.0, %v1182
      %v1505 = vsub.f32 0.0, %v1187
      %v1506 = vsub.f32 0.0, %v1190
      %v1507 = vsub.f32 0.0, %v1195
      %v1508 = vsub.f32 0.0, %v1198
      %v1509 = vsub.f32 0.0, %v1203
      %v1510 = vsub.f32 0.0, %v1206
      %v1511 = vsub.f32 0.0, %v1211
      %v1512 = vsub.f32 0.0, %v1214
      %v1513 = vsub.f32 0.0, %v1219
      %v1514 = vsub.f32 0.0, %v1222
      %v1515 = vsub.f32 0.0, %v1227
      %v1516 = vsub.f32 0.0, %v1230
      %v1517 = vsub.f32 0.0, %v1235
      %v1518 = vsub.f32 0.0, %v1238
      %v1519 = vsub.f32 0.0, %v1243
      %v1520 = vsub.f32 0.0, %v1246
      %v1521 = vsub.f32 0.0, %v1251
      %v1522 = vsub.f32 0.0, %v1254
      %v1523 = vsub.f32 0.0, %v1259
      %v1524 = vsub.f32 0.0, %v1262
      %v1525 = vsub.f32 0.0, %v1267
      %v1526 = vsub.f32 0.0, %v1270
      %v1527 = vsub.f32 0.0, %v1275
      %v1528 = vsub.f32 0.0, %v1278
      %v1529 = vsub.f32 0.0, %v1283
      %v1530 = vsub.f32 0.0, %v1286
      %v1531 = vsub.f32 0.0, %v1291
      %v1532 = vsub.f32 0.0, %v1294
      %v1533 = vsub.f32 0.0, %v1299
      %v1534 = vsub.f32 0.0, %v1302
      %v1535 = vsub.f32 0.0, %v1307
      %v1536 = vsub.f32 0.0, %v1310
      %v1537 = vsub.f32 0.0, %v1315
      %v1538 = vsub.f32 0.0, %v1318
      %v1539 = vsub.f32 0.0, %v1323
      %v1540 = vsub.f32 0.0, %v1326
      %v1541 = vsub.f32 0.0, %v1331
      %v1542 = vsub.f32 0.0, %v1334
      %v1543 = vsub.f32 0.0, %v1339
      %v1544 = vsub.f32 0.0, %v1342
      %v1545 = vsub.f32 0.0, %v1347
      %v1546 = vsub.f32 0.0, %v1350
      %v1547 = vsub.f32 0.0, %v1355
      %v1548 = vsub.f32 0.0, %v1358
      %v1549 = vsub.f32 0.0, %v1363
      %v1550 = vsub.f32 0.0, %v1366
      %v1551 = vsub.f32 0.0, %v1371
      %v1552 = vsub.f32 0.0, %v1374
      %v1553 = vsub.f32 0.0, %v1379
      %v1554 = vsub.f32 0.0, %v1382
      %v1555 = vsub.f32 0.0, %v1387
      %v1556 = vsub.f32 0.0, %v1390
      %v1557 = vsub.f32 0.0, %v1395
      %v1558 = vsub.f32 0.0, %v1398
      %v1559 = vsub.f32 0.0, %v1403
      %v1560 = vsub.f32 0.0, %v1406
      %v1561 = vsub.f32 0.0, %v1411
      %v1562 = vsub.f32 0.0, %v1414
      %v1563 = vsub.f32 0.0, %v1419
      %v1564 = vsub.f32 0.0, %v1422
      %v1565 = vsub.f32 0.0, %v1427
      %v1566 = vsub.f32 0.0, %v1430
      %v1567 = vsub.f32 0.0, %v1435
      %v1568 = vsub.f32 0.0, %v1438
      %v1569 = vmul.f32 %v1441, 1.442695
      %v1570 = vpow.pop %v1569
      %v1571 = vmul.f32 %v1442, 1.442695
      %v1572 = vpow.pop %v1571
      %v1573 = vmul.f32 %v1443, 1.442695
      %v1574 = vpow.pop %v1573
      %v1575 = vmul.f32 %v1444, 1.442695
      %v1576 = vpow.pop %v1575
      %v1577 = vmul.f32 %v1445, 1.442695
      %v1578 = vpow.pop %v1577
      %v1579 = vmul.f32 %v1446, 1.442695
      %v1580 = vpow.pop %v1579
      %v1581 = vmul.f32 %v1447, 1.442695
      %v1582 = vpow.pop %v1581
      %v1583 = vmul.f32 %v1448, 1.442695
      %v1584 = vpow.pop %v1583
      %v1585 = vmul.f32 %v1449, 1.442695
      %v1586 = vpow.pop %v1585
      %v1587 = vmul.f32 %v1450, 1.442695
      %v1588 = vpow.pop %v1587
      %v1589 = vmul.f32 %v1451, 1.442695
      %v1590 = vpow.pop %v1589
      %v1591 = vmul.f32 %v1452, 1.442695
      %v1592 = vpow.pop %v1591
      %v1593 = vmul.f32 %v1453, 1.442695
      %v1594 = vpow.pop %v1593
      %v1595 = vmul.f32 %v1454, 1.442695
      %v1596 = vpow.pop %v1595
      %v1597 = vmul.f32 %v1455, 1.442695
      %v1598 = vpow.pop %v1597
      %v1599 = vmul.f32 %v1456, 1.442695
      %v1600 = vpow.pop %v1599
      %v1601 = vmul.f32 %v1457, 1.442695
      %v1602 = vpow.pop %v1601
      %v1603 = vmul.f32 %v1458, 1.442695
      %v1604 = vpow.pop %v1603
      %v1605 = vmul.f32 %v1459, 1.442695
      %v1606 = vpow.pop %v1605
      %v1607 = vmul.f32 %v1460, 1.442695
      %v1608 = vpow.pop %v1607
      %v1609 = vmul.f32 %v1461, 1.442695
      %v1610 = vpow.pop %v1609
      %v1611 = vmul.f32 %v1462, 1.442695
      %v1612 = vpow.pop %v1611
      %v1613 = vmul.f32 %v1463, 1.442695
      %v1614 = vpow.pop %v1613
      %v1615 = vmul.f32 %v1464, 1.442695
      %v1616 = vpow.pop %v1615
      %v1617 = vmul.f32 %v1465, 1.442695
      %v1618 = vpow.pop %v1617
      %v1619 = vmul.f32 %v1466, 1.442695
      %v1620 = vpow.pop %v1619
      %v1621 = vmul.f32 %v1467, 1.442695
      %v1622 = vpow.pop %v1621
      %v1623 = vmul.f32 %v1468, 1.442695
      %v1624 = vpow.pop %v1623
      %v1625 = vmul.f32 %v1469, 1.442695
      %v1626 = vpow.pop %v1625
      %v1627 = vmul.f32 %v1470, 1.442695
      %v1628 = vpow.pop %v1627
      %v1629 = vmul.f32 %v1471, 1.442695
      %v1630 = vpow.pop %v1629
      %v1631 = vmul.f32 %v1472, 1.442695
      %v1632 = vpow.pop %v1631
      %v1633 = vmul.f32 %v1473, 1.442695
      %v1634 = vpow.pop %v1633
      %v1635 = vmul.f32 %v1474, 1.442695
      %v1636 = vpow.pop %v1635
      %v1637 = vmul.f32 %v1475, 1.442695
      %v1638 = vpow.pop %v1637
      %v1639 = vmul.f32 %v1476, 1.442695
      %v1640 = vpow.pop %v1639
      %v1641 = vmul.f32 %v1477, 1.442695
      %v1642 = vpow.pop %v1641
      %v1643 = vmul.f32 %v1478, 1.442695
      %v1644 = vpow.pop %v1643
      %v1645 = vmul.f32 %v1479, 1.442695
      %v1646 = vpow.pop %v1645
      %v1647 = vmul.f32 %v1480, 1.442695
      %v1648 = vpow.pop %v1647
      %v1649 = vmul.f32 %v1481, 1.442695
      %v1650 = vpow.pop %v1649
      %v1651 = vmul.f32 %v1482, 1.442695
      %v1652 = vpow.pop %v1651
      %v1653 = vmul.f32 %v1483, 1.442695
      %v1654 = vpow.pop %v1653
      %v1655 = vmul.f32 %v1484, 1.442695
      %v1656 = vpow.pop %v1655
      %v1657 = vmul.f32 %v1485, 1.442695
      %v1658 = vpow.pop %v1657
      %v1659 = vmul.f32 %v1486, 1.442695
      %v1660 = vpow.pop %v1659
      %v1661 = vmul.f32 %v1487, 1.442695
      %v1662 = vpow.pop %v1661
      %v1663 = vmul.f32 %v1488, 1.442695
      %v1664 = vpow.pop %v1663
      %v1665 = vmul.f32 %v1489, 1.442695
      %v1666 = vpow.pop %v1665
      %v1667 = vmul.f32 %v1490, 1.442695
      %v1668 = vpow.pop %v1667
      %v1669 = vmul.f32 %v1491, 1.442695
      %v1670 = vpow.pop %v1669
      %v1671 = vmul.f32 %v1492, 1.442695
      %v1672 = vpow.pop %v1671
      %v1673 = vmul.f32 %v1493, 1.442695
      %v1674 = vpow.pop %v1673
      %v1675 = vmul.f32 %v1494, 1.442695
      %v1676 = vpow.pop %v1675
      %v1677 = vmul.f32 %v1495, 1.442695
      %v1678 = vpow.pop %v1677
      %v1679 = vmul.f32 %v1496, 1.442695
      %v1680 = vpow.pop %v1679
      %v1681 = vmul.f32 %v1497, 1.442695
      %v1682 = vpow.pop %v1681
      %v1683 = vmul.f32 %v1498, 1.442695
      %v1684 = vpow.pop %v1683
      %v1685 = vmul.f32 %v1499, 1.442695
      %v1686 = vpow.pop %v1685
      %v1687 = vmul.f32 %v1500, 1.442695
      %v1688 = vpow.pop %v1687
      %v1689 = vmul.f32 %v1501, 1.442695
      %v1690 = vpow.pop %v1689
      %v1691 = vmul.f32 %v1502, 1.442695
      %v1692 = vpow.pop %v1691
      %v1693 = vmul.f32 %v1503, 1.442695
      %v1694 = vpow.pop %v1693
      %v1695 = vmul.f32 %v1504, 1.442695
      %v1696 = vpow.pop %v1695
      %v1697 = vmul.f32 %v1505, 1.442695
      %v1698 = vpow.pop %v1697
      %v1699 = vmul.f32 %v1506, 1.442695
      %v1700 = vpow.pop %v1699
      %v1701 = vmul.f32 %v1507, 1.442695
      %v1702 = vpow.pop %v1701
      %v1703 = vmul.f32 %v1508, 1.442695
      %v1704 = vpow.pop %v1703
      %v1705 = vmul.f32 %v1509, 1.442695
      %v1706 = vpow.pop %v1705
      %v1707 = vmul.f32 %v1510, 1.442695
      %v1708 = vpow.pop %v1707
      %v1709 = vmul.f32 %v1511, 1.442695
      %v1710 = vpow.pop %v1709
      %v1711 = vmul.f32 %v1512, 1.442695
      %v1712 = vpow.pop %v1711
      %v1713 = vmul.f32 %v1513, 1.442695
      %v1714 = vpow.pop %v1713
      %v1715 = vmul.f32 %v1514, 1.442695
      %v1716 = vpow.pop %v1715
      %v1717 = vmul.f32 %v1515, 1.442695
      %v1718 = vpow.pop %v1717
      %v1719 = vmul.f32 %v1516, 1.442695
      %v1720 = vpow.pop %v1719
      %v1721 = vmul.f32 %v1517, 1.442695
      %v1722 = vpow.pop %v1721
      %v1723 = vmul.f32 %v1518, 1.442695
      %v1724 = vpow.pop %v1723
      %v1725 = vmul.f32 %v1519, 1.442695
      %v1726 = vpow.pop %v1725
      %v1727 = vmul.f32 %v1520, 1.442695
      %v1728 = vpow.pop %v1727
      %v1729 = vmul.f32 %v1521, 1.442695
      %v1730 = vpow.pop %v1729
      %v1731 = vmul.f32 %v1522, 1.442695
      %v1732 = vpow.pop %v1731
      %v1733 = vmul.f32 %v1523, 1.442695
      %v1734 = vpow.pop %v1733
      %v1735 = vmul.f32 %v1524, 1.442695
      %v1736 = vpow.pop %v1735
      %v1737 = vmul.f32 %v1525, 1.442695
      %v1738 = vpow.pop %v1737
      %v1739 = vmul.f32 %v1526, 1.442695
      %v1740 = vpow.pop %v1739
      %v1741 = vmul.f32 %v1527, 1.442695
      %v1742 = vpow.pop %v1741
      %v1743 = vmul.f32 %v1528, 1.442695
      %v1744 = vpow.pop %v1743
      %v1745 = vmul.f32 %v1529, 1.442695
      %v1746 = vpow.pop %v1745
      %v1747 = vmul.f32 %v1530, 1.442695
      %v1748 = vpow.pop %v1747
      %v1749 = vmul.f32 %v1531, 1.442695
      %v1750 = vpow.pop %v1749
      %v1751 = vmul.f32 %v1532, 1.442695
      %v1752 = vpow.pop %v1751
      %v1753 = vmul.f32 %v1533, 1.442695
      %v1754 = vpow.pop %v1753
      %v1755 = vmul.f32 %v1534, 1.442695
      %v1756 = vpow.pop %v1755
      %v1757 = vmul.f32 %v1535, 1.442695
      %v1758 = vpow.pop %v1757
      %v1759 = vmul.f32 %v1536, 1.442695
      %v1760 = vpow.pop %v1759
      %v1761 = vmul.f32 %v1537, 1.442695
      %v1762 = vpow.pop %v1761
      %v1763 = vmul.f32 %v1538, 1.442695
      %v1764 = vpow.pop %v1763
      %v1765 = vmul.f32 %v1539, 1.442695
      %v1766 = vpow.pop %v1765
      %v1767 = vmul.f32 %v1540, 1.442695
      %v1768 = vpow.pop %v1767
      %v1769 = vmul.f32 %v1541, 1.442695
      %v1770 = vpow.pop %v1769
      %v1771 = vmul.f32 %v1542, 1.442695
      %v1772 = vpow.pop %v1771
      %v1773 = vmul.f32 %v1543, 1.442695
      %v1774 = vpow.pop %v1773
      %v1775 = vmul.f32 %v1544, 1.442695
      %v1776 = vpow.pop %v1775
      %v1777 = vmul.f32 %v1545, 1.442695
      %v1778 = vpow.pop %v1777
      %v1779 = vmul.f32 %v1546, 1.442695
      %v1780 = vpow.pop %v1779
      %v1781 = vmul.f32 %v1547, 1.442695
      %v1782 = vpow.pop %v1781
      %v1783 = vmul.f32 %v1548, 1.442695
      %v1784 = vpow.pop %v1783
      %v1785 = vmul.f32 %v1549, 1.442695
      %v1786 = vpow.pop %v1785
      %v1787 = vmul.f32 %v1550, 1.442695
      %v1788 = vpow.pop %v1787
      %v1789 = vmul.f32 %v1551, 1.442695
      %v1790 = vpow.pop %v1789
      %v1791 = vmul.f32 %v1552, 1.442695
      %v1792 = vpow.pop %v1791
      %v1793 = vmul.f32 %v1553, 1.442695
      %v1794 = vpow.pop %v1793
      %v1795 = vmul.f32 %v1554, 1.442695
      %v1796 = vpow.pop %v1795
      %v1797 = vmul.f32 %v1555, 1.442695
      %v1798 = vpow.pop %v1797
      %v1799 = vmul.f32 %v1556, 1.442695
      %v1800 = vpow.pop %v1799
      %v1801 = vmul.f32 %v1557, 1.442695
      %v1802 = vpow.pop %v1801
      %v1803 = vmul.f32 %v1558, 1.442695
      %v1804 = vpow.pop %v1803
      %v1805 = vmul.f32 %v1559, 1.442695
      %v1806 = vpow.pop %v1805
      %v1807 = vmul.f32 %v1560, 1.442695
      %v1808 = vpow.pop %v1807
      %v1809 = vmul.f32 %v1561, 1.442695
      %v1810 = vpow.pop %v1809
      %v1811 = vmul.f32 %v1562, 1.442695
      %v1812 = vpow.pop %v1811
      %v1813 = vmul.f32 %v1563, 1.442695
      %v1814 = vpow.pop %v1813
      %v1815 = vmul.f32 %v1564, 1.442695
      %v1816 = vpow.pop %v1815
      %v1817 = vmul.f32 %v1565, 1.442695
      %v1818 = vpow.pop %v1817
      %v1819 = vmul.f32 %v1566, 1.442695
      %v1820 = vpow.pop %v1819
      %v1821 = vmul.f32 %v1567, 1.442695
      %v1822 = vpow.pop %v1821
      %v1823 = vmul.f32 %v1568, 1.442695
      %v1824 = vpow.pop %v1823
      %v1825 = vadd.f32 %v1570, 1.0
      %v1826 = vadd.f32 %v1572, 1.0
      %v1827 = vadd.f32 %v1574, 1.0
      %v1828 = vadd.f32 %v1576, 1.0
      %v1829 = vadd.f32 %v1578, 1.0
      %v1830 = vadd.f32 %v1580, 1.0
      %v1831 = vadd.f32 %v1582, 1.0
      %v1832 = vadd.f32 %v1584, 1.0
      %v1833 = vadd.f32 %v1586, 1.0
      %v1834 = vadd.f32 %v1588, 1.0
      %v1835 = vadd.f32 %v1590, 1.0
      %v1836 = vadd.f32 %v1592, 1.0
      %v1837 = vadd.f32 %v1594, 1.0
      %v1838 = vadd.f32 %v1596, 1.0
      %v1839 = vadd.f32 %v1598, 1.0
      %v1840 = vadd.f32 %v1600, 1.0
      %v1841 = vadd.f32 %v1602, 1.0
      %v1842 = vadd.f32 %v1604, 1.0
      %v1843 = vadd.f32 %v1606, 1.0
      %v1844 = vadd.f32 %v1608, 1.0
      %v1845 = vadd.f32 %v1610, 1.0
      %v1846 = vadd.f32 %v1612, 1.0
      %v1847 = vadd.f32 %v1614, 1.0
      %v1848 = vadd.f32 %v1616, 1.0
      %v1849 = vadd.f32 %v1618, 1.0
      %v1850 = vadd.f32 %v1620, 1.0
      %v1851 = vadd.f32 %v1622, 1.0
      %v1852 = vadd.f32 %v1624, 1.0
      %v1853 = vadd.f32 %v1626, 1.0
      %v1854 = vadd.f32 %v1628, 1.0
      %v1855 = vadd.f32 %v1630, 1.0
      %v1856 = vadd.f32 %v1632, 1.0
      %v1857 = vadd.f32 %v1634, 1.0
      %v1858 = vadd.f32 %v1636, 1.0
      %v1859 = vadd.f32 %v1638, 1.0
      %v1860 = vadd.f32 %v1640, 1.0
      %v1861 = vadd.f32 %v1642, 1.0
      %v1862 = vadd.f32 %v1644, 1.0
      %v1863 = vadd.f32 %v1646, 1.0
      %v1864 = vadd.f32 %v1648, 1.0
      %v1865 = vadd.f32 %v1650, 1.0
      %v1866 = vadd.f32 %v1652, 1.0
      %v1867 = vadd.f32 %v1654, 1.0
      %v1868 = vadd.f32 %v1656, 1.0
      %v1869 = vadd.f32 %v1658, 1.0
      %v1870 = vadd.f32 %v1660, 1.0
      %v1871 = vadd.f32 %v1662, 1.0
      %v1872 = vadd.f32 %v1664, 1.0
      %v1873 = vadd.f32 %v1666, 1.0
      %v1874 = vadd.f32 %v1668, 1.0
      %v1875 = vadd.f32 %v1670, 1.0
      %v1876 = vadd.f32 %v1672, 1.0
      %v1877 = vadd.f32 %v1674, 1.0
      %v1878 = vadd.f32 %v1676, 1.0
      %v1879 = vadd.f32 %v1678, 1.0
      %v1880 = vadd.f32 %v1680, 1.0
      %v1881 = vadd.f32 %v1682, 1.0
      %v1882 = vadd.f32 %v1684, 1.0
      %v1883 = vadd.f32 %v1686, 1.0
      %v1884 = vadd.f32 %v1688, 1.0
      %v1885 = vadd.f32 %v1690, 1.0
      %v1886 = vadd.f32 %v1692, 1.0
      %v1887 = vadd.f32 %v1694, 1.0
      %v1888 = vadd.f32 %v1696, 1.0
      %v1889 = vadd.f32 %v1698, 1.0
      %v1890 = vadd.f32 %v1700, 1.0
      %v1891 = vadd.f32 %v1702, 1.0
      %v1892 = vadd.f32 %v1704, 1.0
      %v1893 = vadd.f32 %v1706, 1.0
      %v1894 = vadd.f32 %v1708, 1.0
      %v1895 = vadd.f32 %v1710, 1.0
      %v1896 = vadd.f32 %v1712, 1.0
      %v1897 = vadd.f32 %v1714, 1.0
      %v1898 = vadd.f32 %v1716, 1.0
      %v1899 = vadd.f32 %v1718, 1.0
      %v1900 = vadd.f32 %v1720, 1.0
      %v1901 = vadd.f32 %v1722, 1.0
      %v1902 = vadd.f32 %v1724, 1.0
      %v1903 = vadd.f32 %v1726, 1.0
      %v1904 = vadd.f32 %v1728, 1.0
      %v1905 = vadd.f32 %v1730, 1.0
      %v1906 = vadd.f32 %v1732, 1.0
      %v1907 = vadd.f32 %v1734, 1.0
      %v1908 = vadd.f32 %v1736, 1.0
      %v1909 = vadd.f32 %v1738, 1.0
      %v1910 = vadd.f32 %v1740, 1.0
      %v1911 = vadd.f32 %v1742, 1.0
      %v1912 = vadd.f32 %v1744, 1.0
      %v1913 = vadd.f32 %v1746, 1.0
      %v1914 = vadd.f32 %v1748, 1.0
      %v1915 = vadd.f32 %v1750, 1.0
      %v1916 = vadd.f32 %v1752, 1.0
      %v1917 = vadd.f32 %v1754, 1.0
      %v1918 = vadd.f32 %v1756, 1.0
      %v1919 = vadd.f32 %v1758, 1.0
      %v1920 = vadd.f32 %v1760, 1.0
      %v1921 = vadd.f32 %v1762, 1.0
      %v1922 = vadd.f32 %v1764, 1.0
      %v1923 = vadd.f32 %v1766, 1.0
      %v1924 = vadd.f32 %v1768, 1.0
      %v1925 = vadd.f32 %v1770, 1.0
      %v1926 = vadd.f32 %v1772, 1.0
      %v1927 = vadd.f32 %v1774, 1.0
      %v1928 = vadd.f32 %v1776, 1.0
      %v1929 = vadd.f32 %v1778, 1.0
      %v1930 = vadd.f32 %v1780, 1.0
      %v1931 = vadd.f32 %v1782, 1.0
      %v1932 = vadd.f32 %v1784, 1.0
      %v1933 = vadd.f32 %v1786, 1.0
      %v1934 = vadd.f32 %v1788, 1.0
      %v1935 = vadd.f32 %v1790, 1.0
      %v1936 = vadd.f32 %v1792, 1.0
      %v1937 = vadd.f32 %v1794, 1.0
      %v1938 = vadd.f32 %v1796, 1.0
      %v1939 = vadd.f32 %v1798, 1.0
      %v1940 = vadd.f32 %v1800, 1.0
      %v1941 = vadd.f32 %v1802, 1.0
      %v1942 = vadd.f32 %v1804, 1.0
      %v1943 = vadd.f32 %v1806, 1.0
      %v1944 = vadd.f32 %v1808, 1.0
      %v1945 = vadd.f32 %v1810, 1.0
      %v1946 = vadd.f32 %v1812, 1.0
      %v1947 = vadd.f32 %v1814, 1.0
      %v1948 = vadd.f32 %v1816, 1.0
      %v1949 = vadd.f32 %v1818, 1.0
      %v1950 = vadd.f32 %v1820, 1.0
      %v1951 = vadd.f32 %v1822, 1.0
      %v1952 = vadd.f32 %v1824, 1.0
      %v1953 = vrcp.pop %v1825
      %v1954 = vrcp.pop %v1826
      %v1955 = vrcp.pop %v1827
      %v1956 = vrcp.pop %v1828
      %v1957 = vrcp.pop %v1829
      %v1958 = vrcp.pop %v1830
      %v1959 = vrcp.pop %v1831
      %v1960 = vrcp.pop %v1832
      %v1961 = vrcp.pop %v1833
      %v1962 = vrcp.pop %v1834
      %v1963 = vrcp.pop %v1835
      %v1964 = vrcp.pop %v1836
      %v1965 = vrcp.pop %v1837
      %v1966 = vrcp.pop %v1838
      %v1967 = vrcp.pop %v1839
      %v1968 = vrcp.pop %v1840
      %v1969 = vrcp.pop %v1841
      %v1970 = vrcp.pop %v1842
      %v1971 = vrcp.pop %v1843
      %v1972 = vrcp.pop %v1844
      %v1973 = vrcp.pop %v1845
      %v1974 = vrcp.pop %v1846
      %v1975 = vrcp.pop %v1847
      %v1976 = vrcp.pop %v1848
      %v1977 = vrcp.pop %v1849
      %v1978 = vrcp.pop %v1850
      %v1979 = vrcp.pop %v1851
      %v1980 = vrcp.pop %v1852
      %v1981 = vrcp.pop %v1853
      %v1982 = vrcp.pop %v1854
      %v1983 = vrcp.pop %v1855
      %v1984 = vrcp.pop %v1856
      %v1985 = vrcp.pop %v1857
      %v1986 = vrcp.pop %v1858
      %v1987 = vrcp.pop %v1859
      %v1988 = vrcp.pop %v1860
      %v1989 = vrcp.pop %v1861
      %v1990 = vrcp.pop %v1862
      %v1991 = vrcp.pop %v1863
      %v1992 = vrcp.pop %v1864
      %v1993 = vrcp.pop %v1865
      %v1994 = vrcp.pop %v1866
      %v1995 = vrcp.pop %v1867
      %v1996 = vrcp.pop %v1868
      %v1997 = vrcp.pop %v1869
      %v1998 = vrcp.pop %v1870
      %v1999 = vrcp.pop %v1871
      %v2000 = vrcp.pop %v1872
      %v2001 = vrcp.pop %v1873
      %v2002 = vrcp.pop %v1874
      %v2003 = vrcp.pop %v1875
      %v2004 = vrcp.pop %v1876
      %v2005 = vrcp.pop %v1877
      %v2006 = vrcp.pop %v1878
      %v2007 = vrcp.pop %v1879
      %v2008 = vrcp.pop %v1880
      %v2009 = vrcp.pop %v1881
      %v2010 = vrcp.pop %v1882
      %v2011 = vrcp.pop %v1883
      %v2012 = vrcp.pop %v1884
      %v2013 = vrcp.pop %v1885
      %v2014 = vrcp.pop %v1886
      %v2015 = vrcp.pop %v1887
      %v2016 = vrcp.pop %v1888
      %v2017 = vrcp.pop %v1889
      %v2018 = vrcp.pop %v1890
      %v2019 = vrcp.pop %v1891
      %v2020 = vrcp.pop %v1892
      %v2021 = vrcp.pop %v1893
      %v2022 = vrcp.pop %v1894
      %v2023 = vrcp.pop %v1895
      %v2024 = vrcp.pop %v1896
      %v2025 = vrcp.pop %v1897
      %v2026 = vrcp.pop %v1898
      %v2027 = vrcp.pop %v1899
      %v2028 = vrcp.pop %v1900
      %v2029 = vrcp.pop %v1901
      %v2030 = vrcp.pop %v1902
      %v2031 = vrcp.pop %v1903
      %v2032 = vrcp.pop %v1904
      %v2033 = vrcp.pop %v1905
      %v2034 = vrcp.pop %v1906
      %v2035 = vrcp.pop %v1907
      %v2036 = vrcp.pop %v1908
      %v2037 = vrcp.pop %v1909
      %v2038 = vrcp.pop %v1910
      %v2039 = vrcp.pop %v1911
      %v2040 = vrcp.pop %v1912
      %v2041 = vrcp.pop %v1913
      %v2042 = vrcp.pop %v1914
      %v2043 = vrcp.pop %v1915
      %v2044 = vrcp.pop %v1916
      %v2045 = vrcp.pop %v1917
      %v2046 = vrcp.pop %v1918
      %v2047 = vrcp.pop %v1919
      %v2048 = vrcp.pop %v1920
      %v2049 = vrcp.pop %v1921
      %v2050 = vrcp.pop %v1922
      %v2051 = vrcp.pop %v1923
      %v2052 = vrcp.pop %v1924
      %v2053 = vrcp.pop %v1925
      %v2054 = vrcp.pop %v1926
      %v2055 = vrcp.pop %v1927
      %v2056 = vrcp.pop %v1928
      %v2057 = vrcp.pop %v1929
      %v2058 = vrcp.pop %v1930
      %v2059 = vrcp.pop %v1931
      %v2060 = vrcp.pop %v1932
      %v2061 = vrcp.pop %v1933
      %v2062 = vrcp.pop %v1934
      %v2063 = vrcp.pop %v1935
      %v2064 = vrcp.pop %v1936
      %v2065 = vrcp.pop %v1937
      %v2066 = vrcp.pop %v1938
      %v2067 = vrcp.pop %v1939
      %v2068 = vrcp.pop %v1940
      %v2069 = vrcp.pop %v1941
      %v2070 = vrcp.pop %v1942
      %v2071 = vrcp.pop %v1943
      %v2072 = vrcp.pop %v1944
      %v2073 = vrcp.pop %v1945
      %v2074 = vrcp.pop %v1946
      %v2075 = vrcp.pop %v1947
      %v2076 = vrcp.pop %v1948
      %v2077 = vrcp.pop %v1949
      %v2078 = vrcp.pop %v1950
      %v2079 = vrcp.pop %v1951
      %v2080 = vrcp.pop %v1952
      %v2081 = vmul.f32 %v931, %v1953
      %v2082 = vmul.f32 %v934, %v1954
      %v2083 = vmul.f32 %v939, %v1955
      %v2084 = vmul.f32 %v942, %v1956
      %v2085 = vmul.f32 %v947, %v1957
      %v2086 = vmul.f32 %v950, %v1958
      %v2087 = vmul.f32 %v955, %v1959
      %v2088 = vmul.f32 %v958, %v1960
      %v2089 = vmul.f32 %v963, %v1961
      %v2090 = vmul.f32 %v966, %v1962
      %v2091 = vmul.f32 %v971, %v1963
      %v2092 = vmul.f32 %v974, %v1964
      %v2093 = vmul.f32 %v979, %v1965
      %v2094 = vmul.f32 %v982, %v1966
      %v2095 = vmul.f32 %v987, %v1967
      %v2096 = vmul.f32 %v990, %v1968
      %v2097 = vmul.f32 %v995, %v1969
      %v2098 = vmul.f32 %v998, %v1970
      %v2099 = vmul.f32 %v1003, %v1971
      %v2100 = vmul.f32 %v1006, %v1972
      %v2101 = vmul.f32 %v1011, %v1973
      %v2102 = vmul.f32 %v1014, %v1974
      %v2103 = vmul.f32 %v1019, %v1975
      %v2104 = vmul.f32 %v1022, %v1976
      %v2105 = vmul.f32 %v1027, %v1977
      %v2106 = vmul.f32 %v1030, %v1978
      %v2107 = vmul.f32 %v1035, %v1979
      %v2108 = vmul.f32 %v1038, %v1980
      %v2109 = vmul.f32 %v1043, %v1981
      %v2110 = vmul.f32 %v1046, %v1982
      %v2111 = vmul.f32 %v1051, %v1983
      %v2112 = vmul.f32 %v1054, %v1984
      %v2113 = vmul.f32 %v1059, %v1985
      %v2114 = vmul.f32 %v1062, %v1986
      %v2115 = vmul.f32 %v1067, %v1987
      %v2116 = vmul.f32 %v1070, %v1988
      %v2117 = vmul.f32 %v1075, %v1989
      %v2118 = vmul.f32 %v1078, %v1990
      %v2119 = vmul.f32 %v1083, %v1991
      %v2120 = vmul.f32 %v1086, %v1992
      %v2121 = vmul.f32 %v1091, %v1993
      %v2122 = vmul.f32 %v1094, %v1994
      %v2123 = vmul.f32 %v1099, %v1995
      %v2124 = vmul.f32 %v1102, %v1996
      %v2125 = vmul.f32 %v1107, %v1997
      %v2126 = vmul.f32 %v1110, %v1998
      %v2127 = vmul.f32 %v1115, %v1999
      %v2128 = vmul.f32 %v1118, %v2000
      %v2129 = vmul.f32 %v1123, %v2001
      %v2130 = vmul.f32 %v1126, %v2002
      %v2131 = vmul.f32 %v1131, %v2003
      %v2132 = vmul.f32 %v1134, %v2004
      %v2133 = vmul.f32 %v1139, %v2005
      %v2134 = vmul.f32 %v1142, %v2006
      %v2135 = vmul.f32 %v1147, %v2007
      %v2136 = vmul.f32 %v1150, %v2008
      %v2137 = vmul.f32 %v1155, %v2009
      %v2138 = vmul.f32 %v1158, %v2010
      %v2139 = vmul.f32 %v1163, %v2011
      %v2140 = vmul.f32 %v1166, %v2012
      %v2141 = vmul.f32 %v1171, %v2013
      %v2142 = vmul.f32 %v1174, %v2014
      %v2143 = vmul.f32 %v1179, %v2015
      %v2144 = vmul.f32 %v1182, %v2016
      %v2145 = vmul.f32 %v1187, %v2017
      %v2146 = vmul.f32 %v1190, %v2018
      %v2147 = vmul.f32 %v1195, %v2019
      %v2148 = vmul.f32 %v1198, %v2020
      %v2149 = vmul.f32 %v1203, %v2021
      %v2150 = vmul.f32 %v1206, %v2022
      %v2151 = vmul.f32 %v1211, %v2023
      %v2152 = vmul.f32 %v1214, %v2024
      %v2153 = vmul.f32 %v1219, %v2025
      %v2154 = vmul.f32 %v1222, %v2026
      %v2155 = vmul.f32 %v1227, %v2027
      %v2156 = vmul.f32 %v1230, %v2028
      %v2157 = vmul.f32 %v1235, %v2029
      %v2158 = vmul.f32 %v1238, %v2030
      %v2159 = vmul.f32 %v1243, %v2031
      %v2160 = vmul.f32 %v1246, %v2032
      %v2161 = vmul.f32 %v1251, %v2033
      %v2162 = vmul.f32 %v1254, %v2034
      %v2163 = vmul.f32 %v1259, %v2035
      %v2164 = vmul.f32 %v1262, %v2036
      %v2165 = vmul.f32 %v1267, %v2037
      %v2166 = vmul.f32 %v1270, %v2038
      %v2167 = vmul.f32 %v1275, %v2039
      %v2168 = vmul.f32 %v1278, %v2040
      %v2169 = vmul.f32 %v1283, %v2041
      %v2170 = vmul.f32 %v1286, %v2042
      %v2171 = vmul.f32 %v1291, %v2043
      %v2172 = vmul.f32 %v1294, %v2044
      %v2173 = vmul.f32 %v1299, %v2045
      %v2174 = vmul.f32 %v1302, %v2046
      %v2175 = vmul.f32 %v1307, %v2047
      %v2176 = vmul.f32 %v1310, %v2048
      %v2177 = vmul.f32 %v1315, %v2049
      %v2178 = vmul.f32 %v1318, %v2050
      %v2179 = vmul.f32 %v1323, %v2051
      %v2180 = vmul.f32 %v1326, %v2052
      %v2181 = vmul.f32 %v1331, %v2053
      %v2182 = vmul.f32 %v1334, %v2054
      %v2183 = vmul.f32 %v1339, %v2055
      %v2184 = vmul.f32 %v1342, %v2056
      %v2185 = vmul.f32 %v1347, %v2057
      %v2186 = vmul.f32 %v1350, %v2058
      %v2187 = vmul.f32 %v1355, %v2059
      %v2188 = vmul.f32 %v1358, %v2060
      %v2189 = vmul.f32 %v1363, %v2061
      %v2190 = vmul.f32 %v1366, %v2062
      %v2191 = vmul.f32 %v1371, %v2063
      %v2192 = vmul.f32 %v1374, %v2064
      %v2193 = vmul.f32 %v1379, %v2065
      %v2194 = vmul.f32 %v1382, %v2066
      %v2195 = vmul.f32 %v1387, %v2067
      %v2196 = vmul.f32 %v1390, %v2068
      %v2197 = vmul.f32 %v1395, %v2069
      %v2198 = vmul.f32 %v1398, %v2070
      %v2199 = vmul.f32 %v1403, %v2071
      %v2200 = vmul.f32 %v1406, %v2072
      %v2201 = vmul.f32 %v1411, %v2073
      %v2202 = vmul.f32 %v1414, %v2074
      %v2203 = vmul.f32 %v1419, %v2075
      %v2204 = vmul.f32 %v1422, %v2076
      %v2205 = vmul.f32 %v1427, %v2077
      %v2206 = vmul.f32 %v1430, %v2078
      %v2207 = vmul.f32 %v1435, %v2079
      %v2208 = vmul.f32 %v1438, %v2080
      %v2209 = vpack.c.bf16 %v2082, %v2081
      %v2210 = vpack.c.bf16 %v2084, %v2083
      %v2211 = vpack.c.bf16 %v2086, %v2085
      %v2212 = vpack.c.bf16 %v2088, %v2087
      %v2213 = vpack.c.bf16 %v2090, %v2089
      %v2214 = vpack.c.bf16 %v2092, %v2091
      %v2215 = vpack.c.bf16 %v2094, %v2093
      %v2216 = vpack.c.bf16 %v2096, %v2095
      %v2217 = vpack.c.bf16 %v2098, %v2097
      %v2218 = vpack.c.bf16 %v2100, %v2099
      %v2219 = vpack.c.bf16 %v2102, %v2101
      %v2220 = vpack.c.bf16 %v2104, %v2103
      %v2221 = vpack.c.bf16 %v2106, %v2105
      %v2222 = vpack.c.bf16 %v2108, %v2107
      %v2223 = vpack.c.bf16 %v2110, %v2109
      %v2224 = vpack.c.bf16 %v2112, %v2111
      %v2225 = vpack.c.bf16 %v2114, %v2113
      %v2226 = vpack.c.bf16 %v2116, %v2115
      %v2227 = vpack.c.bf16 %v2118, %v2117
      %v2228 = vpack.c.bf16 %v2120, %v2119
      %v2229 = vpack.c.bf16 %v2122, %v2121
      %v2230 = vpack.c.bf16 %v2124, %v2123
      %v2231 = vpack.c.bf16 %v2126, %v2125
      %v2232 = vpack.c.bf16 %v2128, %v2127
      %v2233 = vpack.c.bf16 %v2130, %v2129
      %v2234 = vpack.c.bf16 %v2132, %v2131
      %v2235 = vpack.c.bf16 %v2134, %v2133
      %v2236 = vpack.c.bf16 %v2136, %v2135
      %v2237 = vpack.c.bf16 %v2138, %v2137
      %v2238 = vpack.c.bf16 %v2140, %v2139
      %v2239 = vpack.c.bf16 %v2142, %v2141
      %v2240 = vpack.c.bf16 %v2144, %v2143
      %v2241 = vpack.c.bf16 %v2146, %v2145
      %v2242 = vpack.c.bf16 %v2148, %v2147
      %v2243 = vpack.c.bf16 %v2150, %v2149
      %v2244 = vpack.c.bf16 %v2152, %v2151
      %v2245 = vpack.c.bf16 %v2154, %v2153
      %v2246 = vpack.c.bf16 %v2156, %v2155
      %v2247 = vpack.c.bf16 %v2158, %v2157
      %v2248 = vpack.c.bf16 %v2160, %v2159
      %v2249 = vpack.c.bf16 %v2162, %v2161
      %v2250 = vpack.c.bf16 %v2164, %v2163
      %v2251 = vpack.c.bf16 %v2166, %v2165
      %v2252 = vpack.c.bf16 %v2168, %v2167
      %v2253 = vpack.c.bf16 %v2170, %v2169
      %v2254 = vpack.c.bf16 %v2172, %v2171
      %v2255 = vpack.c.bf16 %v2174, %v2173
      %v2256 = vpack.c.bf16 %v2176, %v2175
      %v2257 = vpack.c.bf16 %v2178, %v2177
      %v2258 = vpack.c.bf16 %v2180, %v2179
      %v2259 = vpack.c.bf16 %v2182, %v2181
      %v2260 = vpack.c.bf16 %v2184, %v2183
      %v2261 = vpack.c.bf16 %v2186, %v2185
      %v2262 = vpack.c.bf16 %v2188, %v2187
      %v2263 = vpack.c.bf16 %v2190, %v2189
      %v2264 = vpack.c.bf16 %v2192, %v2191
      %v2265 = vpack.c.bf16 %v2194, %v2193
      %v2266 = vpack.c.bf16 %v2196, %v2195
      %v2267 = vpack.c.bf16 %v2198, %v2197
      %v2268 = vpack.c.bf16 %v2200, %v2199
      %v2269 = vpack.c.bf16 %v2202, %v2201
      %v2270 = vpack.c.bf16 %v2204, %v2203
      %v2271 = vpack.c.bf16 %v2206, %v2205
      %v2272 = vpack.c.bf16 %v2208, %v2207
      %v2337 = vunpack.c.l.b16 %v2209
      %v2338 = vunpack.c.h.b16 %v2209
      %v2339 = vunpack.c.l.b16 %v2210
      %v2340 = vunpack.c.h.b16 %v2210
      %v2341 = vunpack.c.l.b16 %v2211
      %v2342 = vunpack.c.h.b16 %v2211
      %v2343 = vunpack.c.l.b16 %v2212
      %v2344 = vunpack.c.h.b16 %v2212
      %v2345 = vunpack.c.l.b16 %v2213
      %v2346 = vunpack.c.h.b16 %v2213
      %v2347 = vunpack.c.l.b16 %v2214
      %v2348 = vunpack.c.h.b16 %v2214
      %v2349 = vunpack.c.l.b16 %v2215
      %v2350 = vunpack.c.h.b16 %v2215
      %v2351 = vunpack.c.l.b16 %v2216
      %v2352 = vunpack.c.h.b16 %v2216
      %v2353 = vunpack.c.l.b16 %v2217
      %v2354 = vunpack.c.h.b16 %v2217
      %v2355 = vunpack.c.l.b16 %v2218
      %v2356 = vunpack.c.h.b16 %v2218
      %v2357 = vunpack.c.l.b16 %v2219
      %v2358 = vunpack.c.h.b16 %v2219
      %v2359 = vunpack.c.l.b16 %v2220
      %v2360 = vunpack.c.h.b16 %v2220
      %v2361 = vunpack.c.l.b16 %v2221
      %v2362 = vunpack.c.h.b16 %v2221
      %v2363 = vunpack.c.l.b16 %v2222
      %v2364 = vunpack.c.h.b16 %v2222
      %v2365 = vunpack.c.l.b16 %v2223
      %v2366 = vunpack.c.h.b16 %v2223
      %v2367 = vunpack.c.l.b16 %v2224
      %v2368 = vunpack.c.h.b16 %v2224
      %v2369 = vunpack.c.l.b16 %v2225
      %v2370 = vunpack.c.h.b16 %v2225
      %v2371 = vunpack.c.l.b16 %v2226
      %v2372 = vunpack.c.h.b16 %v2226
      %v2373 = vunpack.c.l.b16 %v2227
      %v2374 = vunpack.c.h.b16 %v2227
      %v2375 = vunpack.c.l.b16 %v2228
      %v2376 = vunpack.c.h.b16 %v2228
      %v2377 = vunpack.c.l.b16 %v2229
      %v2378 = vunpack.c.h.b16 %v2229
      %v2379 = vunpack.c.l.b16 %v2230
      %v2380 = vunpack.c.h.b16 %v2230
      %v2381 = vunpack.c.l.b16 %v2231
      %v2382 = vunpack.c.h.b16 %v2231
      %v2383 = vunpack.c.l.b16 %v2232
      %v2384 = vunpack.c.h.b16 %v2232
      %v2385 = vunpack.c.l.b16 %v2233
      %v2386 = vunpack.c.h.b16 %v2233
      %v2387 = vunpack.c.l.b16 %v2234
      %v2388 = vunpack.c.h.b16 %v2234
      %v2389 = vunpack.c.l.b16 %v2235
      %v2390 = vunpack.c.h.b16 %v2235
      %v2391 = vunpack.c.l.b16 %v2236
      %v2392 = vunpack.c.h.b16 %v2236
      %v2393 = vunpack.c.l.b16 %v2237
      %v2394 = vunpack.c.h.b16 %v2237
      %v2395 = vunpack.c.l.b16 %v2238
      %v2396 = vunpack.c.h.b16 %v2238
      %v2397 = vunpack.c.l.b16 %v2239
      %v2398 = vunpack.c.h.b16 %v2239
      %v2399 = vunpack.c.l.b16 %v2240
      %v2400 = vunpack.c.h.b16 %v2240
      %v2401 = vunpack.c.l.b16 %v2241
      %v2402 = vunpack.c.h.b16 %v2241
      %v2403 = vunpack.c.l.b16 %v2242
      %v2404 = vunpack.c.h.b16 %v2242
      %v2405 = vunpack.c.l.b16 %v2243
      %v2406 = vunpack.c.h.b16 %v2243
      %v2407 = vunpack.c.l.b16 %v2244
      %v2408 = vunpack.c.h.b16 %v2244
      %v2409 = vunpack.c.l.b16 %v2245
      %v2410 = vunpack.c.h.b16 %v2245
      %v2411 = vunpack.c.l.b16 %v2246
      %v2412 = vunpack.c.h.b16 %v2246
      %v2413 = vunpack.c.l.b16 %v2247
      %v2414 = vunpack.c.h.b16 %v2247
      %v2415 = vunpack.c.l.b16 %v2248
      %v2416 = vunpack.c.h.b16 %v2248
      %v2417 = vunpack.c.l.b16 %v2249
      %v2418 = vunpack.c.h.b16 %v2249
      %v2419 = vunpack.c.l.b16 %v2250
      %v2420 = vunpack.c.h.b16 %v2250
      %v2421 = vunpack.c.l.b16 %v2251
      %v2422 = vunpack.c.h.b16 %v2251
      %v2423 = vunpack.c.l.b16 %v2252
      %v2424 = vunpack.c.h.b16 %v2252
      %v2425 = vunpack.c.l.b16 %v2253
      %v2426 = vunpack.c.h.b16 %v2253
      %v2427 = vunpack.c.l.b16 %v2254
      %v2428 = vunpack.c.h.b16 %v2254
      %v2429 = vunpack.c.l.b16 %v2255
      %v2430 = vunpack.c.h.b16 %v2255
      %v2431 = vunpack.c.l.b16 %v2256
      %v2432 = vunpack.c.h.b16 %v2256
      %v2433 = vunpack.c.l.b16 %v2257
      %v2434 = vunpack.c.h.b16 %v2257
      %v2435 = vunpack.c.l.b16 %v2258
      %v2436 = vunpack.c.h.b16 %v2258
      %v2437 = vunpack.c.l.b16 %v2259
      %v2438 = vunpack.c.h.b16 %v2259
      %v2439 = vunpack.c.l.b16 %v2260
      %v2440 = vunpack.c.h.b16 %v2260
      %v2441 = vunpack.c.l.b16 %v2261
      %v2442 = vunpack.c.h.b16 %v2261
      %v2443 = vunpack.c.l.b16 %v2262
      %v2444 = vunpack.c.h.b16 %v2262
      %v2445 = vunpack.c.l.b16 %v2263
      %v2446 = vunpack.c.h.b16 %v2263
      %v2447 = vunpack.c.l.b16 %v2264
      %v2448 = vunpack.c.h.b16 %v2264
      %v2449 = vunpack.c.l.b16 %v2265
      %v2450 = vunpack.c.h.b16 %v2265
      %v2451 = vunpack.c.l.b16 %v2266
      %v2452 = vunpack.c.h.b16 %v2266
      %v2453 = vunpack.c.l.b16 %v2267
      %v2454 = vunpack.c.h.b16 %v2267
      %v2455 = vunpack.c.l.b16 %v2268
      %v2456 = vunpack.c.h.b16 %v2268
      %v2457 = vunpack.c.l.b16 %v2269
      %v2458 = vunpack.c.h.b16 %v2269
      %v2459 = vunpack.c.l.b16 %v2270
      %v2460 = vunpack.c.h.b16 %v2270
      %v2461 = vunpack.c.l.b16 %v2271
      %v2462 = vunpack.c.h.b16 %v2271
      %v2463 = vunpack.c.l.b16 %v2272
      %v2464 = vunpack.c.h.b16 %v2272
      %v2465 = vpack.c.b16 %v2337, %v2337
      %v2466 = vpack.c.b16 %v2338, %v2338
      %v2467 = vpack.c.b16 %v2339, %v2339
      %v2468 = vpack.c.b16 %v2340, %v2340
      %v2469 = vpack.c.b16 %v2341, %v2341
      %v2470 = vpack.c.b16 %v2342, %v2342
      %v2471 = vpack.c.b16 %v2343, %v2343
      %v2472 = vpack.c.b16 %v2344, %v2344
      %v2473 = vpack.c.b16 %v2345, %v2345
      %v2474 = vpack.c.b16 %v2346, %v2346
      %v2475 = vpack.c.b16 %v2347, %v2347
      %v2476 = vpack.c.b16 %v2348, %v2348
      %v2477 = vpack.c.b16 %v2349, %v2349
      %v2478 = vpack.c.b16 %v2350, %v2350
      %v2479 = vpack.c.b16 %v2351, %v2351
      %v2480 = vpack.c.b16 %v2352, %v2352
      %v2481 = vpack.c.b16 %v2353, %v2353
      %v2482 = vpack.c.b16 %v2354, %v2354
      %v2483 = vpack.c.b16 %v2355, %v2355
      %v2484 = vpack.c.b16 %v2356, %v2356
      %v2485 = vpack.c.b16 %v2357, %v2357
      %v2486 = vpack.c.b16 %v2358, %v2358
      %v2487 = vpack.c.b16 %v2359, %v2359
      %v2488 = vpack.c.b16 %v2360, %v2360
      %v2489 = vpack.c.b16 %v2361, %v2361
      %v2490 = vpack.c.b16 %v2362, %v2362
      %v2491 = vpack.c.b16 %v2363, %v2363
      %v2492 = vpack.c.b16 %v2364, %v2364
      %v2493 = vpack.c.b16 %v2365, %v2365
      %v2494 = vpack.c.b16 %v2366, %v2366
      %v2495 = vpack.c.b16 %v2367, %v2367
      %v2496 = vpack.c.b16 %v2368, %v2368
      %v2497 = vpack.c.b16 %v2369, %v2369
      %v2498 = vpack.c.b16 %v2370, %v2370
      %v2499 = vpack.c.b16 %v2371, %v2371
      %v2500 = vpack.c.b16 %v2372, %v2372
      %v2501 = vpack.c.b16 %v2373, %v2373
      %v2502 = vpack.c.b16 %v2374, %v2374
      %v2503 = vpack.c.b16 %v2375, %v2375
      %v2504 = vpack.c.b16 %v2376, %v2376
      %v2505 = vpack.c.b16 %v2377, %v2377
      %v2506 = vpack.c.b16 %v2378, %v2378
      %v2507 = vpack.c.b16 %v2379, %v2379
      %v2508 = vpack.c.b16 %v2380, %v2380
      %v2509 = vpack.c.b16 %v2381, %v2381
      %v2510 = vpack.c.b16 %v2382, %v2382
      %v2511 = vpack.c.b16 %v2383, %v2383
      %v2512 = vpack.c.b16 %v2384, %v2384
      %v2513 = vpack.c.b16 %v2385, %v2385
      %v2514 = vpack.c.b16 %v2386, %v2386
      %v2515 = vpack.c.b16 %v2387, %v2387
      %v2516 = vpack.c.b16 %v2388, %v2388
      %v2517 = vpack.c.b16 %v2389, %v2389
      %v2518 = vpack.c.b16 %v2390, %v2390
      %v2519 = vpack.c.b16 %v2391, %v2391
      %v2520 = vpack.c.b16 %v2392, %v2392
      %v2521 = vpack.c.b16 %v2393, %v2393
      %v2522 = vpack.c.b16 %v2394, %v2394
      %v2523 = vpack.c.b16 %v2395, %v2395
      %v2524 = vpack.c.b16 %v2396, %v2396
      %v2525 = vpack.c.b16 %v2397, %v2397
      %v2526 = vpack.c.b16 %v2398, %v2398
      %v2527 = vpack.c.b16 %v2399, %v2399
      %v2528 = vpack.c.b16 %v2400, %v2400
      %v2529 = vpack.c.b16 %v2401, %v2401
      %v2530 = vpack.c.b16 %v2402, %v2402
      %v2531 = vpack.c.b16 %v2403, %v2403
      %v2532 = vpack.c.b16 %v2404, %v2404
      %v2533 = vpack.c.b16 %v2405, %v2405
      %v2534 = vpack.c.b16 %v2406, %v2406
      %v2535 = vpack.c.b16 %v2407, %v2407
      %v2536 = vpack.c.b16 %v2408, %v2408
      %v2537 = vpack.c.b16 %v2409, %v2409
      %v2538 = vpack.c.b16 %v2410, %v2410
      %v2539 = vpack.c.b16 %v2411, %v2411
      %v2540 = vpack.c.b16 %v2412, %v2412
      %v2541 = vpack.c.b16 %v2413, %v2413
      %v2542 = vpack.c.b16 %v2414, %v2414
      %v2543 = vpack.c.b16 %v2415, %v2415
      %v2544 = vpack.c.b16 %v2416, %v2416
      %v2545 = vpack.c.b16 %v2417, %v2417
      %v2546 = vpack.c.b16 %v2418, %v2418
      %v2547 = vpack.c.b16 %v2419, %v2419
      %v2548 = vpack.c.b16 %v2420, %v2420
      %v2549 = vpack.c.b16 %v2421, %v2421
      %v2550 = vpack.c.b16 %v2422, %v2422
      %v2551 = vpack.c.b16 %v2423, %v2423
      %v2552 = vpack.c.b16 %v2424, %v2424
      %v2553 = vpack.c.b16 %v2425, %v2425
      %v2554 = vpack.c.b16 %v2426, %v2426
      %v2555 = vpack.c.b16 %v2427, %v2427
      %v2556 = vpack.c.b16 %v2428, %v2428
      %v2557 = vpack.c.b16 %v2429, %v2429
      %v2558 = vpack.c.b16 %v2430, %v2430
      %v2559 = vpack.c.b16 %v2431, %v2431
      %v2560 = vpack.c.b16 %v2432, %v2432
      %v2561 = vpack.c.b16 %v2433, %v2433
      %v2562 = vpack.c.b16 %v2434, %v2434
      %v2563 = vpack.c.b16 %v2435, %v2435
      %v2564 = vpack.c.b16 %v2436, %v2436
      %v2565 = vpack.c.b16 %v2437, %v2437
      %v2566 = vpack.c.b16 %v2438, %v2438
      %v2567 = vpack.c.b16 %v2439, %v2439
      %v2568 = vpack.c.b16 %v2440, %v2440
      %v2569 = vpack.c.b16 %v2441, %v2441
      %v2570 = vpack.c.b16 %v2442, %v2442
      %v2571 = vpack.c.b16 %v2443, %v2443
      %v2572 = vpack.c.b16 %v2444, %v2444
      %v2573 = vpack.c.b16 %v2445, %v2445
      %v2574 = vpack.c.b16 %v2446, %v2446
      %v2575 = vpack.c.b16 %v2447, %v2447
      %v2576 = vpack.c.b16 %v2448, %v2448
      %v2577 = vpack.c.b16 %v2449, %v2449
      %v2578 = vpack.c.b16 %v2450, %v2450
      %v2579 = vpack.c.b16 %v2451, %v2451
      %v2580 = vpack.c.b16 %v2452, %v2452
      %v2581 = vpack.c.b16 %v2453, %v2453
      %v2582 = vpack.c.b16 %v2454, %v2454
      %v2583 = vpack.c.b16 %v2455, %v2455
      %v2584 = vpack.c.b16 %v2456, %v2456
      %v2585 = vpack.c.b16 %v2457, %v2457
      %v2586 = vpack.c.b16 %v2458, %v2458
      %v2587 = vpack.c.b16 %v2459, %v2459
      %v2588 = vpack.c.b16 %v2460, %v2460
      %v2589 = vpack.c.b16 %v2461, %v2461
      %v2590 = vpack.c.b16 %v2462, %v2462
      %v2591 = vpack.c.b16 %v2463, %v2463
      %v2592 = vpack.c.b16 %v2464, %v2464
      %vm2721 = vcmask 125952
      %2722 = vst.msk [vmem:[%s223] sm:$0xf] %vm2721, %v2465
      %2723 = vst.msk [vmem:[%s223 + $0x4] sm:$0xf] %vm2721, %v2466
      %2724 = vst.msk [vmem:[%s223 + $0x8] sm:$0xf] %vm2721, %v2467
      %2725 = vst.msk [vmem:[%s223 + $0xc] sm:$0xf] %vm2721, %v2468
      %2726 = vst.msk [vmem:[%s223 + $0x10] sm:$0xf] %vm2721, %v2469
      %2727 = vst.msk [vmem:[%s223 + $0x14] sm:$0xf] %vm2721, %v2470
      %2728 = vst.msk [vmem:[%s223 + $0x18] sm:$0xf] %vm2721, %v2471
      %2729 = vst.msk [vmem:[%s223 + $0x1c] sm:$0xf] %vm2721, %v2472
      %2730 = vst.msk [vmem:[%s223 + $0x20] sm:$0xf] %vm2721, %v2473
      %2731 = vst.msk [vmem:[%s223 + $0x24] sm:$0xf] %vm2721, %v2474
      %2732 = vst.msk [vmem:[%s223 + $0x28] sm:$0xf] %vm2721, %v2475
      %2733 = vst.msk [vmem:[%s223 + $0x2c] sm:$0xf] %vm2721, %v2476
      %2734 = vst.msk [vmem:[%s223 + $0x30] sm:$0xf] %vm2721, %v2477
      %2735 = vst.msk [vmem:[%s223 + $0x34] sm:$0xf] %vm2721, %v2478
      %2736 = vst.msk [vmem:[%s223 + $0x38] sm:$0xf] %vm2721, %v2479
      %2737 = vst.msk [vmem:[%s223 + $0x3c] sm:$0xf] %vm2721, %v2480
      %2738 = vst.msk [vmem:[%s223 + $0x40] sm:$0xf] %vm2721, %v2481
      %2739 = vst.msk [vmem:[%s223 + $0x44] sm:$0xf] %vm2721, %v2482
      %2740 = vst.msk [vmem:[%s223 + $0x48] sm:$0xf] %vm2721, %v2483
      %2741 = vst.msk [vmem:[%s223 + $0x4c] sm:$0xf] %vm2721, %v2484
      %2742 = vst.msk [vmem:[%s223 + $0x50] sm:$0xf] %vm2721, %v2485
      %2743 = vst.msk [vmem:[%s223 + $0x54] sm:$0xf] %vm2721, %v2486
      %2744 = vst.msk [vmem:[%s223 + $0x58] sm:$0xf] %vm2721, %v2487
      %2745 = vst.msk [vmem:[%s223 + $0x5c] sm:$0xf] %vm2721, %v2488
      %2746 = vst.msk [vmem:[%s223 + $0x60] sm:$0xf] %vm2721, %v2489
      %2747 = vst.msk [vmem:[%s223 + $0x64] sm:$0xf] %vm2721, %v2490
      %2748 = vst.msk [vmem:[%s223 + $0x68] sm:$0xf] %vm2721, %v2491
      %2749 = vst.msk [vmem:[%s223 + $0x6c] sm:$0xf] %vm2721, %v2492
      %2750 = vst.msk [vmem:[%s223 + $0x70] sm:$0xf] %vm2721, %v2493
      %2751 = vst.msk [vmem:[%s223 + $0x74] sm:$0xf] %vm2721, %v2494
      %2752 = vst.msk [vmem:[%s223 + $0x78] sm:$0xf] %vm2721, %v2495
      %2753 = vst.msk [vmem:[%s223 + $0x7c] sm:$0xf] %vm2721, %v2496
      %2754 = vst.msk [vmem:[%s223 + $0x80] sm:$0xf] %vm2721, %v2497
      %2755 = vst.msk [vmem:[%s223 + $0x84] sm:$0xf] %vm2721, %v2498
      %2756 = vst.msk [vmem:[%s223 + $0x88] sm:$0xf] %vm2721, %v2499
      %2757 = vst.msk [vmem:[%s223 + $0x8c] sm:$0xf] %vm2721, %v2500
      %2758 = vst.msk [vmem:[%s223 + $0x90] sm:$0xf] %vm2721, %v2501
      %2759 = vst.msk [vmem:[%s223 + $0x94] sm:$0xf] %vm2721, %v2502
      %2760 = vst.msk [vmem:[%s223 + $0x98] sm:$0xf] %vm2721, %v2503
      %2761 = vst.msk [vmem:[%s223 + $0x9c] sm:$0xf] %vm2721, %v2504
      %2762 = vst.msk [vmem:[%s223 + $0xa0] sm:$0xf] %vm2721, %v2505
      %2763 = vst.msk [vmem:[%s223 + $0xa4] sm:$0xf] %vm2721, %v2506
      %2764 = vst.msk [vmem:[%s223 + $0xa8] sm:$0xf] %vm2721, %v2507
      %2765 = vst.msk [vmem:[%s223 + $0xac] sm:$0xf] %vm2721, %v2508
      %2766 = vst.msk [vmem:[%s223 + $0xb0] sm:$0xf] %vm2721, %v2509
      %2767 = vst.msk [vmem:[%s223 + $0xb4] sm:$0xf] %vm2721, %v2510
      %2768 = vst.msk [vmem:[%s223 + $0xb8] sm:$0xf] %vm2721, %v2511
      %2769 = vst.msk [vmem:[%s223 + $0xbc] sm:$0xf] %vm2721, %v2512
      %2770 = vst.msk [vmem:[%s223 + $0xc0] sm:$0xf] %vm2721, %v2513
      %2771 = vst.msk [vmem:[%s223 + $0xc4] sm:$0xf] %vm2721, %v2514
      %2772 = vst.msk [vmem:[%s223 + $0xc8] sm:$0xf] %vm2721, %v2515
      %2773 = vst.msk [vmem:[%s223 + $0xcc] sm:$0xf] %vm2721, %v2516
      %2774 = vst.msk [vmem:[%s223 + $0xd0] sm:$0xf] %vm2721, %v2517
      %2775 = vst.msk [vmem:[%s223 + $0xd4] sm:$0xf] %vm2721, %v2518
      %2776 = vst.msk [vmem:[%s223 + $0xd8] sm:$0xf] %vm2721, %v2519
      %2777 = vst.msk [vmem:[%s223 + $0xdc] sm:$0xf] %vm2721, %v2520
      %2778 = vst.msk [vmem:[%s223 + $0xe0] sm:$0xf] %vm2721, %v2521
      %2779 = vst.msk [vmem:[%s223 + $0xe4] sm:$0xf] %vm2721, %v2522
      %2780 = vst.msk [vmem:[%s223 + $0xe8] sm:$0xf] %vm2721, %v2523
      %2781 = vst.msk [vmem:[%s223 + $0xec] sm:$0xf] %vm2721, %v2524
      %2782 = vst.msk [vmem:[%s223 + $0xf0] sm:$0xf] %vm2721, %v2525
      %2783 = vst.msk [vmem:[%s223 + $0xf4] sm:$0xf] %vm2721, %v2526
      %2784 = vst.msk [vmem:[%s223 + $0xf8] sm:$0xf] %vm2721, %v2527
      %2785 = vst.msk [vmem:[%s223 + $0xfc] sm:$0xf] %vm2721, %v2528
      %2786 = vst.msk [vmem:[%s223 + $0x100] sm:$0xf] %vm2721, %v2529
      %2787 = vst.msk [vmem:[%s223 + $0x104] sm:$0xf] %vm2721, %v2530
      %2788 = vst.msk [vmem:[%s223 + $0x108] sm:$0xf] %vm2721, %v2531
      %2789 = vst.msk [vmem:[%s223 + $0x10c] sm:$0xf] %vm2721, %v2532
      %2790 = vst.msk [vmem:[%s223 + $0x110] sm:$0xf] %vm2721, %v2533
      %2791 = vst.msk [vmem:[%s223 + $0x114] sm:$0xf] %vm2721, %v2534
      %2792 = vst.msk [vmem:[%s223 + $0x118] sm:$0xf] %vm2721, %v2535
      %2793 = vst.msk [vmem:[%s223 + $0x11c] sm:$0xf] %vm2721, %v2536
      %2794 = vst.msk [vmem:[%s223 + $0x120] sm:$0xf] %vm2721, %v2537
      %2795 = vst.msk [vmem:[%s223 + $0x124] sm:$0xf] %vm2721, %v2538
      %2796 = vst.msk [vmem:[%s223 + $0x128] sm:$0xf] %vm2721, %v2539
      %2797 = vst.msk [vmem:[%s223 + $0x12c] sm:$0xf] %vm2721, %v2540
      %2798 = vst.msk [vmem:[%s223 + $0x130] sm:$0xf] %vm2721, %v2541
      %2799 = vst.msk [vmem:[%s223 + $0x134] sm:$0xf] %vm2721, %v2542
      %2800 = vst.msk [vmem:[%s223 + $0x138] sm:$0xf] %vm2721, %v2543
      %2801 = vst.msk [vmem:[%s223 + $0x13c] sm:$0xf] %vm2721, %v2544
      %2802 = vst.msk [vmem:[%s223 + $0x140] sm:$0xf] %vm2721, %v2545
      %2803 = vst.msk [vmem:[%s223 + $0x144] sm:$0xf] %vm2721, %v2546
      %2804 = vst.msk [vmem:[%s223 + $0x148] sm:$0xf] %vm2721, %v2547
      %2805 = vst.msk [vmem:[%s223 + $0x14c] sm:$0xf] %vm2721, %v2548
      %2806 = vst.msk [vmem:[%s223 + $0x150] sm:$0xf] %vm2721, %v2549
      %2807 = vst.msk [vmem:[%s223 + $0x154] sm:$0xf] %vm2721, %v2550
      %2808 = vst.msk [vmem:[%s223 + $0x158] sm:$0xf] %vm2721, %v2551
      %2809 = vst.msk [vmem:[%s223 + $0x15c] sm:$0xf] %vm2721, %v2552
      %2810 = vst.msk [vmem:[%s223 + $0x160] sm:$0xf] %vm2721, %v2553
      %2811 = vst.msk [vmem:[%s223 + $0x164] sm:$0xf] %vm2721, %v2554
      %2812 = vst.msk [vmem:[%s223 + $0x168] sm:$0xf] %vm2721, %v2555
      %2813 = vst.msk [vmem:[%s223 + $0x16c] sm:$0xf] %vm2721, %v2556
      %2814 = vst.msk [vmem:[%s223 + $0x170] sm:$0xf] %vm2721, %v2557
      %2815 = vst.msk [vmem:[%s223 + $0x174] sm:$0xf] %vm2721, %v2558
      %2816 = vst.msk [vmem:[%s223 + $0x178] sm:$0xf] %vm2721, %v2559
      %2817 = vst.msk [vmem:[%s223 + $0x17c] sm:$0xf] %vm2721, %v2560
      %2818 = vst.msk [vmem:[%s223 + $0x180] sm:$0xf] %vm2721, %v2561
      %2819 = vst.msk [vmem:[%s223 + $0x184] sm:$0xf] %vm2721, %v2562
      %2820 = vst.msk [vmem:[%s223 + $0x188] sm:$0xf] %vm2721, %v2563
      %2821 = vst.msk [vmem:[%s223 + $0x18c] sm:$0xf] %vm2721, %v2564
      %2822 = vst.msk [vmem:[%s223 + $0x190] sm:$0xf] %vm2721, %v2565
      %2823 = vst.msk [vmem:[%s223 + $0x194] sm:$0xf] %vm2721, %v2566
      %2824 = vst.msk [vmem:[%s223 + $0x198] sm:$0xf] %vm2721, %v2567
      %2825 = vst.msk [vmem:[%s223 + $0x19c] sm:$0xf] %vm2721, %v2568
      %2826 = vst.msk [vmem:[%s223 + $0x1a0] sm:$0xf] %vm2721, %v2569
      %2827 = vst.msk [vmem:[%s223 + $0x1a4] sm:$0xf] %vm2721, %v2570
      %2828 = vst.msk [vmem:[%s223 + $0x1a8] sm:$0xf] %vm2721, %v2571
      %2829 = vst.msk [vmem:[%s223 + $0x1ac] sm:$0xf] %vm2721, %v2572
      %2830 = vst.msk [vmem:[%s223 + $0x1b0] sm:$0xf] %vm2721, %v2573
      %2831 = vst.msk [vmem:[%s223 + $0x1b4] sm:$0xf] %vm2721, %v2574
      %2832 = vst.msk [vmem:[%s223 + $0x1b8] sm:$0xf] %vm2721, %v2575
      %2833 = vst.msk [vmem:[%s223 + $0x1bc] sm:$0xf] %vm2721, %v2576
      %2834 = vst.msk [vmem:[%s223 + $0x1c0] sm:$0xf] %vm2721, %v2577
      %2835 = vst.msk [vmem:[%s223 + $0x1c4] sm:$0xf] %vm2721, %v2578
      %2836 = vst.msk [vmem:[%s223 + $0x1c8] sm:$0xf] %vm2721, %v2579
      %2837 = vst.msk [vmem:[%s223 + $0x1cc] sm:$0xf] %vm2721, %v2580
      %2838 = vst.msk [vmem:[%s223 + $0x1d0] sm:$0xf] %vm2721, %v2581
      %2839 = vst.msk [vmem:[%s223 + $0x1d4] sm:$0xf] %vm2721, %v2582
      %2840 = vst.msk [vmem:[%s223 + $0x1d8] sm:$0xf] %vm2721, %v2583
      %2841 = vst.msk [vmem:[%s223 + $0x1dc] sm:$0xf] %vm2721, %v2584
      %2842 = vst.msk [vmem:[%s223 + $0x1e0] sm:$0xf] %vm2721, %v2585
      %2843 = vst.msk [vmem:[%s223 + $0x1e4] sm:$0xf] %vm2721, %v2586
      %2844 = vst.msk [vmem:[%s223 + $0x1e8] sm:$0xf] %vm2721, %v2587
      %2845 = vst.msk [vmem:[%s223 + $0x1ec] sm:$0xf] %vm2721, %v2588
      %2846 = vst.msk [vmem:[%s223 + $0x1f0] sm:$0xf] %vm2721, %v2589
      %2847 = vst.msk [vmem:[%s223 + $0x1f4] sm:$0xf] %vm2721, %v2590
      %2848 = vst.msk [vmem:[%s223 + $0x1f8] sm:$0xf] %vm2721, %v2591
      %2849 = vst.msk [vmem:[%s223 + $0x1fc] sm:$0xf] %vm2721, %v2592
      %s2850 = smul.u32 128, %s18
      %p2851 = scmp.lt.s32.totalorder %s2850, 511
      %s2852 = scalar_select %p2851, %s2850, 511
      %p2853 = scmp.lt.s32.totalorder %s19, 0
      %s2854 = scalar_select %p2853, %s19, 0
      %s2855 = sadd.s32 %s2854, %s2852
      %s2856 = smul.addr %s2855, 4
      %s2857 = scalar_lea.vmem %s3, %s2856
      // Predicated region
      $region33: #{tpu_custom_call.1} parent=31 // pred_check
        %p2858 = pneg %p124
      $region34: #{tpu_custom_call.1} parent=31 // pred_check_branch
        %2860 = sbr.rel (%p2858) target = $region36
      $region35: #{tpu_custom_call.1} parent=31 // pred_region
        %s2861 = smul.u32 128, %s18
      $region36: #{tpu_custom_call.1} parent=31 // pred_fallthru
        _
    $region32: #{tpu_custom_call.1} parent=5 // pred_fallthru
      _
    %p2862 = scmp.le.s32.totalorder 2, %s9
    // Predicated region
    $region37: #{tpu_custom_call.1} parent=5 // pred_check
      %p2863 = pneg %p2862
    $region38: #{tpu_custom_call.1} parent=5 // pred_check_branch
      %2865 = sbr.rel (%p2863) target = $region40
    $region39: #{tpu_custom_call.1} parent=5 // pred_region
      %s2866 = ssub.s32 %s9, 2
      // Predicated region
      $region41: #{tpu_custom_call.1} parent=39 // pred_check
        %p2867 = pneg %p130
      $region42: #{tpu_custom_call.1} parent=39 // pred_check_branch
        %2869 = sbr.rel (%p2867) target = $region44
      $region43: #{tpu_custom_call.1} parent=39 // pred_region
        %s2870 = smul.u32 128, %s20
        %p2871 = scmp.lt.s32.totalorder %s2870, 511
        %s2872 = scalar_select %p2871, %s2870, 511
        %p2873 = scmp.lt.s32.totalorder %s21, 0
        %s2874 = scalar_select %p2873, %s21, 0
        %s2875 = sadd.s32 %s2874, %s2872
        %s2876 = smul.addr %s2875, 4
        %s2877 = scalar_lea.vmem %s3, %s2876
      $region44: #{tpu_custom_call.1} parent=39 // pred_fallthru
        _
    $region40: #{tpu_custom_call.1} parent=5 // pred_fallthru
      _
  $region6: #{tpu_custom_call.1} parent=0 // loop_footer
    %s13 = sadd.s32 1, %s9
  $region7: #{tpu_custom_call.1} parent=0 // loop_footer_branch
    %8 = sbr.rel target = $region3
  $region8: #{tpu_custom_call.1} parent=0 // loop_exit
    _

</llo_original>
